<compile_context>
chip_gen: v6e
topology: v6e:2x2x1
jax: 0.10.0
libtpu: 0.0.40
codegen_flags: <defaults>
</compile_context>

<pallas_src>
import jax
import jax.numpy as jnp
from jax import lax
from jax.experimental import pallas as pl
from jax.experimental.pallas import tpu as pltpu

# ---- module hyper-parameters (small, synthetic) ----
NUM_CONVS = 2
NODE_DIM = 32
NUM_HEADS = 4
FF_DIM = 64
EDGE_DIM = 16
N_NODES = 8
CUTOFF = 5.0
LN_EPS = 1e-5

assert NODE_DIM % NUM_HEADS == 0


def _layernorm(x, g, b):
    mu = jnp.mean(x, axis=-1, keepdims=True)
    var = jnp.mean((x - mu) ** 2, axis=-1, keepdims=True)
    return (x - mu) * lax.rsqrt(var + LN_EPS) * g + b


def _bf16(x):
    return x.astype(jnp.bfloat16)


def _fused_kernel(
    # ---- layer-invariant inputs (VMEM-resident across the whole grid) ----
    h0_ref, v0_ref, cm_ref, ea_ref, rep_ref, pool_ref, expand_ref,
    # ---- per-layer packed weight slabs (streamed over the L grid axis) ----
    wd_ref, we_ref, wf_ref, b_ref,
    # ---- outputs; double as the carried (h, v) state across layers ----
    h_ref, v_ref,
):
    N, D = h0_ref.shape
    F = wf_ref.shape[1]
    l = pl.program_id(0)

    @pl.when(l == 0)
    def _():
        h_ref[...] = h0_ref[...]
        v_ref[...] = v0_ref[...]

    h = h_ref[...]            # [N, D]    f32 state
    v = v_ref[...]            # [3, N, D] f32 state

    cut = cm_ref[:, 0:1]      # [N*N, 1]  cosine-cutoff * adjacency (precomputed)
    mask = cm_ref[:, 1:2]     # [N*N, 1]  adjacency

    # ---- per-layer weight slabs: bf16 matrices, f32 bias/LN row ----
    wqkv = wd_ref[0, :, 0:4 * D]                 # q | k | val1 | val2
    wvec = wd_ref[0, :, 4 * D:7 * D]
    wo   = wd_ref[0, :, 7 * D:10 * D]
    w1   = wd_ref[0, :, 10 * D:10 * D + F]
    wdkv = we_ref[0]                             # dk | dv1 | dv2
    w2   = wf_ref[0]

    ln1_g = b_ref[0, :, 0:D]
    ln1_b = b_ref[0, :, D:2 * D]
    bqkv  = b_ref[0, :, 2 * D:6 * D]
    bdkv  = b_ref[0, :, 6 * D:9 * D]
    bo    = b_ref[0, :, 9 * D:12 * D]
    ln2_g = b_ref[0, :, 12 * D:13 * D]
    ln2_b = b_ref[0, :, 13 * D:14 * D]
    b1    = b_ref[0, :, 14 * D:14 * D + F]
    b2    = b_ref[0, :, 14 * D + F:15 * D + F]

    # ---------- LayerNorm 1 + fused q|k|val projection (one bf16 MXU push) ----------
    x = _layernorm(h, ln1_g, ln1_b)
    qkv = jnp.dot(_bf16(x), wqkv, preferred_element_type=jnp.float32) + bqkv   # [N, 4D]
    q = qkv[:, 0:D]

    # ---------- vector-channel projection: single [3N,D]x[D,3D] bf16 matmul ----------
    vp = jnp.dot(_bf16(v.reshape(3 * N, D)), wvec,
                 preferred_element_type=jnp.float32)                           # [3N, 3D]
    vpd = vp[:, 0:D] * vp[:, D:2 * D]                                          # [3N, D]
    vec_dot = vpd[0:N] + vpd[N:2 * N] + vpd[2 * N:3 * N]                       # [N, D]
    vp3 = vp[:, 2 * D:3 * D].reshape(3, N, D)

    # ---------- edge projections for ALL pairs, kept flat [N*N, 3D] ----------
    dkv = jax.nn.silu(
        jnp.dot(ea_ref[...], wdkv, preferred_element_type=jnp.float32) + bdkv)
    dk = dkv[:, 0:D]
    dv1 = dkv[:, D:2 * D]
    dv2 = dkv[:, 2 * D:3 * D]

    # ---------- pair broadcasts of q / (k|val) via selector matmuls (idle MXU) ----------
    q_pairs = jnp.dot(rep_ref[:, 0:N], q,
                      preferred_element_type=jnp.float32)                      # [N*N, D]
    kv_pairs = jnp.dot(rep_ref[:, N:2 * N], qkv[:, D:4 * D],
                       preferred_element_type=jnp.float32)                     # [N*N, 3D]

    # ---------- attention, fully flat; [N,N,D] formed once per final reduction ----------
    p = q_pairs * kv_pairs[:, 0:D] * dk                                        # [N*N, D]
    logits = jnp.dot(p, pool_ref[...], preferred_element_type=jnp.float32)     # [N*N, H]
    attn = jax.nn.silu(logits) * cut                                           # [N*N, H]
    attn_exp = jnp.dot(attn, expand_ref[...],
                       preferred_element_type=jnp.float32)                     # [N*N, D]

    dx = jnp.sum((attn_exp * kv_pairs[:, D:2 * D] * dv1).reshape(N, N, D),
                 axis=1)                                                       # [N, D]
    s1m = (kv_pairs[:, 2 * D:3 * D] * dv2 * mask).reshape(N, N, D)             # [N, N, D]
    dvec = jnp.sum(v[:, None, :, :] * s1m[None, :, :, :], axis=2)              # [3, N, D]

    # ---------- output projection & residual updates ----------
    o = jnp.dot(_bf16(dx), wo, preferred_element_type=jnp.float32) + bo        # [N, 3D]
    o1 = o[:, 0:D]
    o2 = o[:, D:2 * D]
    o3 = o[:, 2 * D:3 * D]

    h_mid = h + vec_dot * o2 + o3
    v_ref[...] = v + vp3 * o1[None, :, :] + dvec

    # ---------- feed-forward block (pre-LN, residual); stats/residuals in f32 ----------
    y = _layernorm(h_mid, ln2_g, ln2_b)
    f = jax.nn.silu(jnp.dot(_bf16(y), w1, preferred_element_type=jnp.float32) + b1)
    f = jnp.dot(_bf16(f), w2, preferred_element_type=jnp.float32) + b2
    h_ref[...] = h_mid + f


def _const_spec(shape):
    nd = len(shape)
    return pl.BlockSpec(tuple(shape), lambda l, nd=nd: (0,) * nd)


def _stacked_spec(shape):
    nd = len(shape)
    return pl.BlockSpec((1,) + tuple(shape[1:]),
                        lambda l, nd=nd: (l,) + (0,) * (nd - 1))


def processor_forward(h, v, edge_index, edge_attr, edge_len, params):
    """Processor.forward: all EquivariantTransformerLayer's in one pallas_call."""
    N, D = h.shape
    L = len(params)
    H = NUM_HEADS
    Dh = D // H
    E = EDGE_DIM

    src, dst = edge_index[0], edge_index[1]
    # Densify the edge list (glue). Assumes no duplicate (src, dst) edges (radius
    # graph); duplicates would be dropped, not summed as an edge-list scatter would.
    mask = jnp.zeros((N, N), jnp.float32).at[dst, src].set(1.0)          # [i_dst, j_src]
    elen = jnp.zeros((N, N), jnp.float32).at[dst, src].set(edge_len)
    ea = jnp.zeros((N, N, E), jnp.float32).at[dst, src].set(edge_attr)

    # cosine cutoff * adjacency: layer-invariant -> computed once, outside the kernel
    cut = 0.5 * (jnp.cos(elen * (jnp.pi / CUTOFF)) + 1.0)
    cut = cut * jnp.where(elen < CUTOFF, 1.0, 0.0) * mask
    cm = jnp.stack([cut.reshape(N * N), mask.reshape(N * N)], axis=1)    # [N*N, 2]

    # per-head pooling / expansion matrices (block-diagonal ones), MXU-friendly
    head_of_col = jnp.arange(D, dtype=jnp.int32) // Dh
    pool = (head_of_col[:, None] == jnp.arange(H, dtype=jnp.int32)[None, :]
            ).astype(jnp.float32)                                        # [D, H]
    expand = pool.T                                                      # [H, D]

    # pair-row selector matrices: row i*N+j picks node i (dst) / node j (src)
    r = jnp.arange(N * N, dtype=jnp.int32)
    nodes = jnp.arange(N, dtype=jnp.int32)
    rep = jnp.concatenate(
        [((r // N)[:, None] == nodes[None, :]).astype(jnp.float32),
         ((r % N)[:, None] == nodes[None, :]).astype(jnp.float32)],
        axis=1)                                                          # [N*N, 2N]

    v3 = jnp.transpose(v, (1, 0, 2))          # [N,3,D] -> kernel layout [3,N,D]

    # ---- pack per-layer weights into 4 stacked slabs (fewer, larger DMAs) ----
    def S(fn, dt):
        return jnp.stack([fn(p) for p in params], axis=0).astype(dt)

    wd = S(lambda p: jnp.concatenate(
        [p["wq"], p["wk"], p["wv"][:, :2 * D], p["wvec"], p["wo"], p["w1"]],
        axis=1), jnp.bfloat16)                                           # [L, D, 10D+F]
    we = S(lambda p: jnp.concatenate([p["wdk"], p["wdv"][:, :2 * D]], axis=1),
           jnp.bfloat16)                                                 # [L, E, 3D]
    wf = S(lambda p: p["w2"], jnp.bfloat16)                              # [L, F, D]
    bias = S(lambda p: jnp.concatenate(
        [p["ln1_g"], p["ln1_b"], p["bq"], p["bk"], p["bv"][:, :2 * D],
         p["bdk"], p["bdv"][:, :2 * D], p["bo"],
         p["ln2_g"], p["ln2_b"], p["b1"], p["b2"]], axis=1),
        jnp.float32)                                                     # [L, 1, 15D+F]

    const_inputs = (h, v3, cm, ea.reshape(N * N, E).astype(jnp.bfloat16),
                    rep, pool, expand)
    stacked_inputs = (wd, we, wf, bias)
    inputs = const_inputs + stacked_inputs
    in_specs = ([_const_spec(a.shape) for a in const_inputs]
                + [_stacked_spec(a.shape) for a in stacked_inputs])

    h_out, v_out = pl.pallas_call(
        _fused_kernel,
        grid=(L,),
        out_shape=(
            jax.ShapeDtypeStruct((N, D), jnp.float32),
            jax.ShapeDtypeStruct((3, N, D), jnp.float32),
        ),
        in_specs=in_specs,
        out_specs=(
            pl.BlockSpec((N, D), lambda l: (0, 0)),
            pl.BlockSpec((3, N, D), lambda l: (0, 0, 0)),
        ),
        compiler_params=pltpu.CompilerParams(
            dimension_semantics=("arbitrary",)),
    )(*inputs)
    return h_out, jnp.transpose(v_out, (1, 0, 2))


def _init_layer_params(key):
    D, F, E = NODE_DIM, FF_DIM, EDGE_DIM
    ks = jax.random.split(key, 9)

    def lin(k, din, dout):
        return jax.random.normal(k, (din, dout), jnp.float32) / jnp.sqrt(float(din))

    return dict(
        ln1_g=jnp.ones((1, D), jnp.float32), ln1_b=jnp.zeros((1, D), jnp.float32),
        wq=lin(ks[0], D, D), bq=jnp.zeros((1, D), jnp.float32),
        wk=lin(ks[1], D, D), bk=jnp.zeros((1, D), jnp.float32),
        wv=lin(ks[2], D, 3 * D), bv=jnp.zeros((1, 3 * D), jnp.float32),
        wvec=lin(ks[3], D, 3 * D),
        wdk=lin(ks[4], E, D), bdk=jnp.zeros((1, D), jnp.float32),
        wdv=lin(ks[5], E, 3 * D), bdv=jnp.zeros((1, 3 * D), jnp.float32),
        wo=lin(ks[6], D, 3 * D), bo=jnp.zeros((1, 3 * D), jnp.float32),
        ln2_g=jnp.ones((1, D), jnp.float32), ln2_b=jnp.zeros((1, D), jnp.float32),
        w1=lin(ks[7], D, F), b1=jnp.zeros((1, F), jnp.float32),
        w2=lin(ks[8], F, D), b2=jnp.zeros((1, D), jnp.float32),
    )


def init_params(key):
    keys = jax.random.split(key, NUM_CONVS)
    return [_init_layer_params(k) for k in keys]


if __name__ == "__main__":
    key = jax.random.PRNGKey(0)
    k1, k2, k3, k4, kp = jax.random.split(key, 5)

    N = N_NODES
    h = jax.random.normal(k1, (N, NODE_DIM), jnp.float32)
    v = jax.random.normal(k2, (N, 3, NODE_DIM), jnp.float32)

    # deterministic ring graph (both directions): E = 2*N edges
    idx = jnp.arange(N, dtype=jnp.int32)
    src = jnp.concatenate([idx, idx])
    dst = jnp.concatenate([(idx + 1) % N, (idx - 1) % N])
    edge_index = jnp.stack([src, dst]).astype(jnp.int32)          # [2, E]
    E = edge_index.shape[1]
    edge_attr = jax.random.normal(k3, (E, EDGE_DIM), jnp.float32)
    edge_len = jax.random.uniform(k4, (E,), jnp.float32, 0.8, 3.0)

    params = init_params(kp)

    fwd = jax.jit(processor_forward)
    h_out, v_out = fwd(h, v, edge_index, edge_attr, edge_len, params)
    jax.block_until_ready((h_out, v_out))

    assert h_out.shape == (N, NODE_DIM)
    assert v_out.shape == (N, 3, NODE_DIM)
    assert bool(jnp.all(jnp.isfinite(h_out))) and bool(jnp.all(jnp.isfinite(v_out)))
    print("KERNEL_OK")
</pallas_src>

<mosaic_0001>
module attributes {stable_mosaic.version = 11 : i64} {
  func.func @_fused_kernel(%arg0: i32, %arg1: memref<8x32xf32, #tpu.memory_space<vmem>>, %arg2: memref<3x8x32xf32, #tpu.memory_space<vmem>>, %arg3: memref<64x2xf32, #tpu.memory_space<vmem>>, %arg4: memref<64x16xbf16, #tpu.memory_space<vmem>>, %arg5: memref<64x16xf32, #tpu.memory_space<vmem>>, %arg6: memref<32x4xf32, #tpu.memory_space<vmem>>, %arg7: memref<4x32xf32, #tpu.memory_space<vmem>>, %arg8: memref<1x32x384xbf16, #tpu.memory_space<vmem>>, %arg9: memref<1x16x96xbf16, #tpu.memory_space<vmem>>, %arg10: memref<1x64x32xbf16, #tpu.memory_space<vmem>>, %arg11: memref<1x1x544xf32, #tpu.memory_space<vmem>>, %arg12: memref<8x32xf32, #tpu.memory_space<vmem>>, %arg13: memref<3x8x32xf32, #tpu.memory_space<vmem>>) attributes {dimension_semantics = [#tpu.dimension_semantics<arbitrary>], iteration_bounds = array<i64: 2>, scalar_prefetch = 0 : i64, scratch_operands = 0 : i64, tpu.core_type = #tpu.core_type<tc>, window_params = [{pipeline_mode = #tpu.pipeline_mode<synchronous>, transform_indices = @transform_0, window_bounds = array<i64: 8, 32>}, {pipeline_mode = #tpu.pipeline_mode<synchronous>, transform_indices = @transform_1, window_bounds = array<i64: 3, 8, 32>}, {pipeline_mode = #tpu.pipeline_mode<synchronous>, transform_indices = @transform_2, window_bounds = array<i64: 64, 2>}, {pipeline_mode = #tpu.pipeline_mode<synchronous>, transform_indices = @transform_3, window_bounds = array<i64: 64, 16>}, {pipeline_mode = #tpu.pipeline_mode<synchronous>, transform_indices = @transform_4, window_bounds = array<i64: 64, 16>}, {pipeline_mode = #tpu.pipeline_mode<synchronous>, transform_indices = @transform_5, window_bounds = array<i64: 32, 4>}, {pipeline_mode = #tpu.pipeline_mode<synchronous>, transform_indices = @transform_6, window_bounds = array<i64: 4, 32>}, {transform_indices = @transform_7, window_bounds = array<i64: 1, 32, 384>}, {transform_indices = @transform_8, window_bounds = array<i64: 1, 16, 96>}, {transform_indices = @transform_9, window_bounds = array<i64: 1, 64, 32>}, {transform_indices = @transform_10, window_bounds = array<i64: 1, 1, 544>}, {pipeline_mode = #tpu.pipeline_mode<synchronous>, transform_indices = @transform_11, window_bounds = array<i64: 8, 32>}, {pipeline_mode = #tpu.pipeline_mode<synchronous>, transform_indices = @transform_12, window_bounds = array<i64: 3, 8, 32>}]} {
    %c0_i32 = arith.constant 0 : i32
    %0 = arith.cmpi eq, %arg0, %c0_i32 : i32
    %1 = arith.extui %0 : i1 to i32
    %c0_i32_0 = arith.constant 0 : i32
    %2 = arith.cmpi ne, %1, %c0_i32_0 : i32
    scf.if %2 {
      %c0_80 = arith.constant 0 : index
      %c0_81 = arith.constant 0 : index
      %180 = vector.load %arg1[%c0_80, %c0_81] : memref<8x32xf32, #tpu.memory_space<vmem>>, vector<8x32xf32>
      %c0_82 = arith.constant 0 : index
      %c0_83 = arith.constant 0 : index
      %181 = vector.load %arg12[%c0_82, %c0_83] : memref<8x32xf32, #tpu.memory_space<vmem>>, vector<8x32xf32>
      tpu.vector_store %arg12[%c0_82, %c0_83], %180 {strides = array<i32>} : memref<8x32xf32, #tpu.memory_space<vmem>>, vector<8x32xf32>,
      %c0_84 = arith.constant 0 : index
      %c0_85 = arith.constant 0 : index
      %c0_86 = arith.constant 0 : index
      %182 = vector.load %arg2[%c0_84, %c0_85, %c0_86] : memref<3x8x32xf32, #tpu.memory_space<vmem>>, vector<3x8x32xf32>
      %c0_87 = arith.constant 0 : index
      %c0_88 = arith.constant 0 : index
      %c0_89 = arith.constant 0 : index
      %183 = vector.load %arg13[%c0_87, %c0_88, %c0_89] : memref<3x8x32xf32, #tpu.memory_space<vmem>>, vector<3x8x32xf32>
      tpu.vector_store %arg13[%c0_87, %c0_88, %c0_89], %182 {strides = array<i32>} : memref<3x8x32xf32, #tpu.memory_space<vmem>>, vector<3x8x32xf32>,
    } else {
    }
    %c0 = arith.constant 0 : index
    %c0_1 = arith.constant 0 : index
    %3 = vector.load %arg12[%c0, %c0_1] : memref<8x32xf32, #tpu.memory_space<vmem>>, vector<8x32xf32>
    %c0_2 = arith.constant 0 : index
    %c0_3 = arith.constant 0 : index
    %c0_4 = arith.constant 0 : index
    %4 = vector.load %arg13[%c0_2, %c0_3, %c0_4] : memref<3x8x32xf32, #tpu.memory_space<vmem>>, vector<3x8x32xf32>
    %c0_5 = arith.constant 0 : index
    %c0_6 = arith.constant 0 : index
    %5 = vector.load %arg3[%c0_5, %c0_6] : memref<64x2xf32, #tpu.memory_space<vmem>>, vector<64x1xf32>
    %c0_7 = arith.constant 0 : index
    %c1 = arith.constant 1 : index
    %6 = vector.load %arg3[%c0_7, %c1] : memref<64x2xf32, #tpu.memory_space<vmem>>, vector<64x1xf32>
    %c0_8 = arith.constant 0 : index
    %c0_9 = arith.constant 0 : index
    %c0_10 = arith.constant 0 : index
    %7 = vector.load %arg8[%c0_8, %c0_9, %c0_10] : memref<1x32x384xbf16, #tpu.memory_space<vmem>>, vector<1x32x128xbf16>
    %8 = vector.shape_cast %7 : vector<1x32x128xbf16> to vector<32x128xbf16>
    %c0_11 = arith.constant 0 : index
    %c0_12 = arith.constant 0 : index
    %c128 = arith.constant 128 : index
    %9 = vector.load %arg8[%c0_11, %c0_12, %c128] : memref<1x32x384xbf16, #tpu.memory_space<vmem>>, vector<1x32x96xbf16>
    %10 = vector.shape_cast %9 : vector<1x32x96xbf16> to vector<32x96xbf16>
    %c0_13 = arith.constant 0 : index
    %c0_14 = arith.constant 0 : index
    %c224 = arith.constant 224 : index
    %11 = vector.load %arg8[%c0_13, %c0_14, %c224] : memref<1x32x384xbf16, #tpu.memory_space<vmem>>, vector<1x32x96xbf16>
    %12 = vector.shape_cast %11 : vector<1x32x96xbf16> to vector<32x96xbf16>
    %c0_15 = arith.constant 0 : index
    %c0_16 = arith.constant 0 : index
    %c320 = arith.constant 320 : index
    %13 = vector.load %arg8[%c0_15, %c0_16, %c320] : memref<1x32x384xbf16, #tpu.memory_space<vmem>>, vector<1x32x64xbf16>
    %14 = vector.shape_cast %13 : vector<1x32x64xbf16> to vector<32x64xbf16>
    %c0_17 = arith.constant 0 : index
    %c0_18 = arith.constant 0 : index
    %c0_19 = arith.constant 0 : index
    %15 = vector.load %arg9[%c0_17, %c0_18, %c0_19] : memref<1x16x96xbf16, #tpu.memory_space<vmem>>, vector<1x16x96xbf16>
    %16 = vector.shape_cast %15 : vector<1x16x96xbf16> to vector<16x96xbf16>
    %c0_20 = arith.constant 0 : index
    %c0_21 = arith.constant 0 : index
    %c0_22 = arith.constant 0 : index
    %17 = vector.load %arg10[%c0_20, %c0_21, %c0_22] : memref<1x64x32xbf16, #tpu.memory_space<vmem>>, vector<1x64x32xbf16>
    %18 = vector.shape_cast %17 : vector<1x64x32xbf16> to vector<64x32xbf16>
    %c0_23 = arith.constant 0 : index
    %c0_24 = arith.constant 0 : index
    %c0_25 = arith.constant 0 : index
    %19 = vector.load %arg11[%c0_23, %c0_24, %c0_25] : memref<1x1x544xf32, #tpu.memory_space<vmem>>, vector<1x1x32xf32>
    %20 = vector.shape_cast %19 : vector<1x1x32xf32> to vector<1x32xf32>
    %c0_26 = arith.constant 0 : index
    %c0_27 = arith.constant 0 : index
    %c32 = arith.constant 32 : index
    %21 = vector.load %arg11[%c0_26, %c0_27, %c32] : memref<1x1x544xf32, #tpu.memory_space<vmem>>, vector<1x1x32xf32>
    %22 = vector.shape_cast %21 : vector<1x1x32xf32> to vector<1x32xf32>
    %c0_28 = arith.constant 0 : index
    %c0_29 = arith.constant 0 : index
    %c64 = arith.constant 64 : index
    %23 = vector.load %arg11[%c0_28, %c0_29, %c64] : memref<1x1x544xf32, #tpu.memory_space<vmem>>, vector<1x1x128xf32>
    %24 = vector.shape_cast %23 : vector<1x1x128xf32> to vector<1x128xf32>
    %c0_30 = arith.constant 0 : index
    %c0_31 = arith.constant 0 : index
    %c192 = arith.constant 192 : index
    %25 = vector.load %arg11[%c0_30, %c0_31, %c192] : memref<1x1x544xf32, #tpu.memory_space<vmem>>, vector<1x1x96xf32>
    %26 = vector.shape_cast %25 : vector<1x1x96xf32> to vector<1x96xf32>
    %c0_32 = arith.constant 0 : index
    %c0_33 = arith.constant 0 : index
    %c288 = arith.constant 288 : index
    %27 = vector.load %arg11[%c0_32, %c0_33, %c288] : memref<1x1x544xf32, #tpu.memory_space<vmem>>, vector<1x1x96xf32>
    %28 = vector.shape_cast %27 : vector<1x1x96xf32> to vector<1x96xf32>
    %c0_34 = arith.constant 0 : index
    %c0_35 = arith.constant 0 : index
    %c384 = arith.constant 384 : index
    %29 = vector.load %arg11[%c0_34, %c0_35, %c384] : memref<1x1x544xf32, #tpu.memory_space<vmem>>, vector<1x1x32xf32>
    %30 = vector.shape_cast %29 : vector<1x1x32xf32> to vector<1x32xf32>
    %c0_36 = arith.constant 0 : index
    %c0_37 = arith.constant 0 : index
    %c416 = arith.constant 416 : index
    %31 = vector.load %arg11[%c0_36, %c0_37, %c416] : memref<1x1x544xf32, #tpu.memory_space<vmem>>, vector<1x1x32xf32>
    %32 = vector.shape_cast %31 : vector<1x1x32xf32> to vector<1x32xf32>
    %c0_38 = arith.constant 0 : index
    %c0_39 = arith.constant 0 : index
    %c448 = arith.constant 448 : index
    %33 = vector.load %arg11[%c0_38, %c0_39, %c448] : memref<1x1x544xf32, #tpu.memory_space<vmem>>, vector<1x1x64xf32>
    %34 = vector.shape_cast %33 : vector<1x1x64xf32> to vector<1x64xf32>
    %c0_40 = arith.constant 0 : index
    %c0_41 = arith.constant 0 : index
    %c512 = arith.constant 512 : index
    %35 = vector.load %arg11[%c0_40, %c0_41, %c512] : memref<1x1x544xf32, #tpu.memory_space<vmem>>, vector<1x1x32xf32>
    %36 = vector.shape_cast %35 : vector<1x1x32xf32> to vector<1x32xf32>
    %cst = arith.constant dense<0.000000e+00> : vector<8xf32>
    %37 = vector.multi_reduction <add>, %3, %cst [1] : vector<8x32xf32> to vector<8xf32>
    %38 = vector.shape_cast %37 : vector<8xf32> to vector<8x1xf32>
    %cst_42 = arith.constant 3.200000e+01 : f32
    %39 = vector.broadcast %cst_42 : f32 to vector<8x1xf32>
    %40 = arith.divf %38, %39 : vector<8x1xf32>
    %41 = vector.broadcast %40 : vector<8x1xf32> to vector<8x32xf32>
    %42 = arith.subf %3, %41 : vector<8x32xf32>
    %43 = arith.mulf %42, %42 : vector<8x32xf32>
    %cst_43 = arith.constant dense<0.000000e+00> : vector<8xf32>
    %44 = vector.multi_reduction <add>, %43, %cst_43 [1] : vector<8x32xf32> to vector<8xf32>
    %45 = vector.shape_cast %44 : vector<8xf32> to vector<8x1xf32>
    %cst_44 = arith.constant 3.200000e+01 : f32
    %46 = vector.broadcast %cst_44 : f32 to vector<8x1xf32>
    %47 = arith.divf %45, %46 : vector<8x1xf32>
    %48 = vector.broadcast %40 : vector<8x1xf32> to vector<8x32xf32>
    %49 = arith.subf %3, %48 : vector<8x32xf32>
    %cst_45 = arith.constant 9.99999974E-6 : f32
    %50 = vector.broadcast %cst_45 : f32 to vector<8x1xf32>
    %51 = arith.addf %47, %50 : vector<8x1xf32>
    %52 = math.rsqrt %51 : vector<8x1xf32>
    %53 = vector.broadcast %52 : vector<8x1xf32> to vector<8x32xf32>
    %54 = arith.mulf %49, %53 : vector<8x32xf32>
    %55 = vector.broadcast %20 : vector<1x32xf32> to vector<8x32xf32>
    %56 = arith.mulf %54, %55 : vector<8x32xf32>
    %57 = vector.broadcast %22 : vector<1x32xf32> to vector<8x32xf32>
    %58 = arith.addf %56, %57 : vector<8x32xf32>
    %59 = arith.truncf %58 : vector<8x32xf32> to vector<8x32xbf16>
    %cst_46 = arith.constant dense<0.000000e+00> : vector<8x128xf32>
    %60 = tpu.matmul %59, %8, %cst_46 {dimension_numbers = #tpu.dot_dimension_numbers<[1], [0], [0], [1], [0, 0, 1, 1], [], []>} : vector<8x32xbf16>, vector<32x128xbf16>, vector<8x128xf32> -> vector<8x128xf32>
    %61 = vector.broadcast %24 : vector<1x128xf32> to vector<8x128xf32>
    %62 = arith.addf %60, %61 : vector<8x128xf32>
    %63 = vector.extract_strided_slice %62 {offsets = [0, 0], sizes = [8, 32], strides = [1, 1]} : vector<8x128xf32> to vector<8x32xf32>
    %64 = vector.shape_cast %4 : vector<3x8x32xf32> to vector<24x32xf32>
    %65 = arith.truncf %64 : vector<24x32xf32> to vector<24x32xbf16>
    %cst_47 = arith.constant dense<0.000000e+00> : vector<24x96xf32>
    %66 = tpu.matmul %65, %10, %cst_47 {dimension_numbers = #tpu.dot_dimension_numbers<[1], [0], [0], [1], [0, 0, 1, 1], [], []>} : vector<24x32xbf16>, vector<32x96xbf16>, vector<24x96xf32> -> vector<24x96xf32>
    %67 = vector.extract_strided_slice %66 {offsets = [0, 0], sizes = [24, 32], strides = [1, 1]} : vector<24x96xf32> to vector<24x32xf32>
    %68 = vector.extract_strided_slice %66 {offsets = [0, 32], sizes = [24, 32], strides = [1, 1]} : vector<24x96xf32> to vector<24x32xf32>
    %69 = arith.mulf %67, %68 : vector<24x32xf32>
    %70 = vector.extract_strided_slice %69 {offsets = [0, 0], sizes = [8, 32], strides = [1, 1]} : vector<24x32xf32> to vector<8x32xf32>
    %71 = vector.extract_strided_slice %69 {offsets = [8, 0], sizes = [8, 32], strides = [1, 1]} : vector<24x32xf32> to vector<8x32xf32>
    %72 = arith.addf %70, %71 : vector<8x32xf32>
    %73 = vector.extract_strided_slice %69 {offsets = [16, 0], sizes = [8, 32], strides = [1, 1]} : vector<24x32xf32> to vector<8x32xf32>
    %74 = arith.addf %72, %73 : vector<8x32xf32>
    %75 = vector.extract_strided_slice %66 {offsets = [0, 64], sizes = [24, 32], strides = [1, 1]} : vector<24x96xf32> to vector<24x32xf32>
    %76 = vector.shape_cast %75 : vector<24x32xf32> to vector<3x8x32xf32>
    %c0_48 = arith.constant 0 : index
    %c0_49 = arith.constant 0 : index
    %77 = vector.load %arg4[%c0_48, %c0_49] : memref<64x16xbf16, #tpu.memory_space<vmem>>, vector<64x16xbf16>
    %cst_50 = arith.constant dense<0.000000e+00> : vector<64x96xf32>
    %78 = tpu.matmul %77, %16, %cst_50 {dimension_numbers = #tpu.dot_dimension_numbers<[1], [0], [0], [1], [0, 0, 1, 1], [], []>} : vector<64x16xbf16>, vector<16x96xbf16>, vector<64x96xf32> -> vector<64x96xf32>
    %79 = vector.broadcast %26 : vector<1x96xf32> to vector<64x96xf32>
    %80 = arith.addf %78, %79 : vector<64x96xf32>
    %81 = arith.negf %80 : vector<64x96xf32>
    %82 = math.exp %81 : vector<64x96xf32>
    %cst_51 = arith.constant 1.000000e+00 : f32
    %83 = vector.broadcast %cst_51 : f32 to vector<64x96xf32>
    %84 = arith.addf %83, %82 : vector<64x96xf32>
    %85 = arith.divf %83, %84 : vector<64x96xf32>
    %86 = arith.mulf %80, %85 : vector<64x96xf32>
    %87 = vector.extract_strided_slice %86 {offsets = [0, 0], sizes = [64, 32], strides = [1, 1]} : vector<64x96xf32> to vector<64x32xf32>
    %88 = vector.extract_strided_slice %86 {offsets = [0, 32], sizes = [64, 32], strides = [1, 1]} : vector<64x96xf32> to vector<64x32xf32>
    %89 = vector.extract_strided_slice %86 {offsets = [0, 64], sizes = [64, 32], strides = [1, 1]} : vector<64x96xf32> to vector<64x32xf32>
    %c0_52 = arith.constant 0 : index
    %c0_53 = arith.constant 0 : index
    %90 = vector.load %arg5[%c0_52, %c0_53] : memref<64x16xf32, #tpu.memory_space<vmem>>, vector<64x8xf32>
    %cst_54 = arith.constant dense<0.000000e+00> : vector<64x32xf32>
    %91 = tpu.matmul %90, %63, %cst_54 {dimension_numbers = #tpu.dot_dimension_numbers<[1], [0], [0], [1], [0, 0, 1, 1], [], []>} : vector<64x8xf32>, vector<8x32xf32>, vector<64x32xf32> -> vector<64x32xf32>
    %c0_55 = arith.constant 0 : index
    %c8 = arith.constant 8 : index
    %92 = vector.load %arg5[%c0_55, %c8] : memref<64x16xf32, #tpu.memory_space<vmem>>, vector<64x8xf32>
    %93 = vector.extract_strided_slice %62 {offsets = [0, 32], sizes = [8, 96], strides = [1, 1]} : vector<8x128xf32> to vector<8x96xf32>
    %cst_56 = arith.constant dense<0.000000e+00> : vector<64x96xf32>
    %94 = tpu.matmul %92, %93, %cst_56 {dimension_numbers = #tpu.dot_dimension_numbers<[1], [0], [0], [1], [0, 0, 1, 1], [], []>} : vector<64x8xf32>, vector<8x96xf32>, vector<64x96xf32> -> vector<64x96xf32>
    %95 = vector.extract_strided_slice %94 {offsets = [0, 0], sizes = [64, 32], strides = [1, 1]} : vector<64x96xf32> to vector<64x32xf32>
    %96 = arith.mulf %91, %95 : vector<64x32xf32>
    %97 = arith.mulf %96, %87 : vector<64x32xf32>
    %c0_57 = arith.constant 0 : index
    %c0_58 = arith.constant 0 : index
    %98 = vector.load %arg6[%c0_57, %c0_58] : memref<32x4xf32, #tpu.memory_space<vmem>>, vector<32x4xf32>
    %cst_59 = arith.constant dense<0.000000e+00> : vector<64x4xf32>
    %99 = tpu.matmul %97, %98, %cst_59 {dimension_numbers = #tpu.dot_dimension_numbers<[1], [0], [0], [1], [0, 0, 1, 1], [], []>} : vector<64x32xf32>, vector<32x4xf32>, vector<64x4xf32> -> vector<64x4xf32>
    %100 = arith.negf %99 : vector<64x4xf32>
    %101 = math.exp %100 : vector<64x4xf32>
    %cst_60 = arith.constant 1.000000e+00 : f32
    %102 = vector.broadcast %cst_60 : f32 to vector<64x4xf32>
    %103 = arith.addf %102, %101 : vector<64x4xf32>
    %104 = arith.divf %102, %103 : vector<64x4xf32>
    %105 = arith.mulf %99, %104 : vector<64x4xf32>
    %106 = vector.broadcast %5 : vector<64x1xf32> to vector<64x4xf32>
    %107 = arith.mulf %105, %106 : vector<64x4xf32>
    %c0_61 = arith.constant 0 : index
    %c0_62 = arith.constant 0 : index
    %108 = vector.load %arg7[%c0_61, %c0_62] : memref<4x32xf32, #tpu.memory_space<vmem>>, vector<4x32xf32>
    %cst_63 = arith.constant dense<0.000000e+00> : vector<64x32xf32>
    %109 = tpu.matmul %107, %108, %cst_63 {dimension_numbers = #tpu.dot_dimension_numbers<[1], [0], [0], [1], [0, 0, 1, 1], [], []>} : vector<64x4xf32>, vector<4x32xf32>, vector<64x32xf32> -> vector<64x32xf32>
    %110 = vector.extract_strided_slice %94 {offsets = [0, 32], sizes = [64, 32], strides = [1, 1]} : vector<64x96xf32> to vector<64x32xf32>
    %111 = arith.mulf %109, %110 : vector<64x32xf32>
    %112 = arith.mulf %111, %88 : vector<64x32xf32>
    %113 = vector.shape_cast %112 : vector<64x32xf32> to vector<8x8x32xf32>
    %cst_64 = arith.constant dense<0.000000e+00> : vector<8x32xf32>
    %114 = vector.multi_reduction <add>, %113, %cst_64 [1] : vector<8x8x32xf32> to vector<8x32xf32>
    %115 = vector.extract_strided_slice %94 {offsets = [0, 64], sizes = [64, 32], strides = [1, 1]} : vector<64x96xf32> to vector<64x32xf32>
    %116 = arith.mulf %115, %89 : vector<64x32xf32>
    %117 = vector.broadcast %6 : vector<64x1xf32> to vector<64x32xf32>
    %118 = arith.mulf %116, %117 : vector<64x32xf32>
    %119 = vector.shape_cast %118 : vector<64x32xf32> to vector<8x8x32xf32>
    %120 = vector.shape_cast %4 : vector<3x8x32xf32> to vector<3x1x8x32xf32>
    %121 = vector.shape_cast %119 : vector<8x8x32xf32> to vector<1x8x8x32xf32>
    %122 = vector.broadcast %120 : vector<3x1x8x32xf32> to vector<3x8x8x32xf32>
    %123 = vector.broadcast %121 : vector<1x8x8x32xf32> to vector<3x8x8x32xf32>
    %124 = arith.mulf %122, %123 : vector<3x8x8x32xf32>
    %cst_65 = arith.constant dense<0.000000e+00> : vector<3x8x32xf32>
    %125 = vector.multi_reduction <add>, %124, %cst_65 [2] : vector<3x8x8x32xf32> to vector<3x8x32xf32>
    %126 = arith.truncf %114 : vector<8x32xf32> to vector<8x32xbf16>
    %cst_66 = arith.constant dense<0.000000e+00> : vector<8x96xf32>
    %127 = tpu.matmul %126, %12, %cst_66 {dimension_numbers = #tpu.dot_dimension_numbers<[1], [0], [0], [1], [0, 0, 1, 1], [], []>} : vector<8x32xbf16>, vector<32x96xbf16>, vector<8x96xf32> -> vector<8x96xf32>
    %128 = vector.broadcast %28 : vector<1x96xf32> to vector<8x96xf32>
    %129 = arith.addf %127, %128 : vector<8x96xf32>
    %130 = vector.extract_strided_slice %129 {offsets = [0, 0], sizes = [8, 32], strides = [1, 1]} : vector<8x96xf32> to vector<8x32xf32>
    %131 = vector.extract_strided_slice %129 {offsets = [0, 32], sizes = [8, 32], strides = [1, 1]} : vector<8x96xf32> to vector<8x32xf32>
    %132 = vector.extract_strided_slice %129 {offsets = [0, 64], sizes = [8, 32], strides = [1, 1]} : vector<8x96xf32> to vector<8x32xf32>
    %133 = arith.mulf %74, %131 : vector<8x32xf32>
    %134 = arith.addf %3, %133 : vector<8x32xf32>
    %135 = arith.addf %134, %132 : vector<8x32xf32>
    %136 = vector.shape_cast %130 : vector<8x32xf32> to vector<1x8x32xf32>
    %137 = vector.broadcast %136 : vector<1x8x32xf32> to vector<3x8x32xf32>
    %138 = arith.mulf %76, %137 : vector<3x8x32xf32>
    %139 = arith.addf %4, %138 : vector<3x8x32xf32>
    %140 = arith.addf %139, %125 : vector<3x8x32xf32>
    %c0_67 = arith.constant 0 : index
    %c0_68 = arith.constant 0 : index
    %c0_69 = arith.constant 0 : index
    %141 = vector.load %arg13[%c0_67, %c0_68, %c0_69] : memref<3x8x32xf32, #tpu.memory_space<vmem>>, vector<3x8x32xf32>
    tpu.vector_store %arg13[%c0_67, %c0_68, %c0_69], %140 {strides = array<i32>} : memref<3x8x32xf32, #tpu.memory_space<vmem>>, vector<3x8x32xf32>,
    %cst_70 = arith.constant dense<0.000000e+00> : vector<8xf32>
    %142 = vector.multi_reduction <add>, %135, %cst_70 [1] : vector<8x32xf32> to vector<8xf32>
    %143 = vector.shape_cast %142 : vector<8xf32> to vector<8x1xf32>
    %cst_71 = arith.constant 3.200000e+01 : f32
    %144 = vector.broadcast %cst_71 : f32 to vector<8x1xf32>
    %145 = arith.divf %143, %144 : vector<8x1xf32>
    %146 = vector.broadcast %145 : vector<8x1xf32> to vector<8x32xf32>
    %147 = arith.subf %135, %146 : vector<8x32xf32>
    %148 = arith.mulf %147, %147 : vector<8x32xf32>
    %cst_72 = arith.constant dense<0.000000e+00> : vector<8xf32>
    %149 = vector.multi_reduction <add>, %148, %cst_72 [1] : vector<8x32xf32> to vector<8xf32>
    %150 = vector.shape_cast %149 : vector<8xf32> to vector<8x1xf32>
    %cst_73 = arith.constant 3.200000e+01 : f32
    %151 = vector.broadcast %cst_73 : f32 to vector<8x1xf32>
    %152 = arith.divf %150, %151 : vector<8x1xf32>
    %153 = vector.broadcast %145 : vector<8x1xf32> to vector<8x32xf32>
    %154 = arith.subf %135, %153 : vector<8x32xf32>
    %cst_74 = arith.constant 9.99999974E-6 : f32
    %155 = vector.broadcast %cst_74 : f32 to vector<8x1xf32>
    %156 = arith.addf %152, %155 : vector<8x1xf32>
    %157 = math.rsqrt %156 : vector<8x1xf32>
    %158 = vector.broadcast %157 : vector<8x1xf32> to vector<8x32xf32>
    %159 = arith.mulf %154, %158 : vector<8x32xf32>
    %160 = vector.broadcast %30 : vector<1x32xf32> to vector<8x32xf32>
    %161 = arith.mulf %159, %160 : vector<8x32xf32>
    %162 = vector.broadcast %32 : vector<1x32xf32> to vector<8x32xf32>
    %163 = arith.addf %161, %162 : vector<8x32xf32>
    %164 = arith.truncf %163 : vector<8x32xf32> to vector<8x32xbf16>
    %cst_75 = arith.constant dense<0.000000e+00> : vector<8x64xf32>
    %165 = tpu.matmul %164, %14, %cst_75 {dimension_numbers = #tpu.dot_dimension_numbers<[1], [0], [0], [1], [0, 0, 1, 1], [], []>} : vector<8x32xbf16>, vector<32x64xbf16>, vector<8x64xf32> -> vector<8x64xf32>
    %166 = vector.broadcast %34 : vector<1x64xf32> to vector<8x64xf32>
    %167 = arith.addf %165, %166 : vector<8x64xf32>
    %168 = arith.negf %167 : vector<8x64xf32>
    %169 = math.exp %168 : vector<8x64xf32>
    %cst_76 = arith.constant 1.000000e+00 : f32
    %170 = vector.broadcast %cst_76 : f32 to vector<8x64xf32>
    %171 = arith.addf %170, %169 : vector<8x64xf32>
    %172 = arith.divf %170, %171 : vector<8x64xf32>
    %173 = arith.mulf %167, %172 : vector<8x64xf32>
    %174 = arith.truncf %173 : vector<8x64xf32> to vector<8x64xbf16>
    %cst_77 = arith.constant dense<0.000000e+00> : vector<8x32xf32>
    %175 = tpu.matmul %174, %18, %cst_77 {dimension_numbers = #tpu.dot_dimension_numbers<[1], [0], [0], [1], [0, 0, 1, 1], [], []>} : vector<8x64xbf16>, vector<64x32xbf16>, vector<8x32xf32> -> vector<8x32xf32>
    %176 = vector.broadcast %36 : vector<1x32xf32> to vector<8x32xf32>
    %177 = arith.addf %175, %176 : vector<8x32xf32>
    %178 = arith.addf %135, %177 : vector<8x32xf32>
    %c0_78 = arith.constant 0 : index
    %c0_79 = arith.constant 0 : index
    %179 = vector.load %arg12[%c0_78, %c0_79] : memref<8x32xf32, #tpu.memory_space<vmem>>, vector<8x32xf32>
    tpu.vector_store %arg12[%c0_78, %c0_79], %178 {strides = array<i32>} : memref<8x32xf32, #tpu.memory_space<vmem>>, vector<8x32xf32>,
    return
  }
  func.func @transform_0(%arg0: i32) -> (i32, i32) {
    %c0_i32 = arith.constant 0 : i32
    %c0_i32_0 = arith.constant 0 : i32
    %c0_i32_1 = arith.constant 0 : i32
    return %c0_i32, %c0_i32_0 : i32, i32
  }
  func.func @transform_1(%arg0: i32) -> (i32, i32, i32) {
    %c0_i32 = arith.constant 0 : i32
    %c0_i32_0 = arith.constant 0 : i32
    %c0_i32_1 = arith.constant 0 : i32
    %c0_i32_2 = arith.constant 0 : i32
    return %c0_i32, %c0_i32_0, %c0_i32_1 : i32, i32, i32
  }
  func.func @transform_2(%arg0: i32) -> (i32, i32) {
    %c0_i32 = arith.constant 0 : i32
    %c0_i32_0 = arith.constant 0 : i32
    %c0_i32_1 = arith.constant 0 : i32
    return %c0_i32, %c0_i32_0 : i32, i32
  }
  func.func @transform_3(%arg0: i32) -> (i32, i32) {
    %c0_i32 = arith.constant 0 : i32
    %c0_i32_0 = arith.constant 0 : i32
    %c0_i32_1 = arith.constant 0 : i32
    return %c0_i32, %c0_i32_0 : i32, i32
  }
  func.func @transform_4(%arg0: i32) -> (i32, i32) {
    %c0_i32 = arith.constant 0 : i32
    %c0_i32_0 = arith.constant 0 : i32
    %c0_i32_1 = arith.constant 0 : i32
    return %c0_i32, %c0_i32_0 : i32, i32
  }
  func.func @transform_5(%arg0: i32) -> (i32, i32) {
    %c0_i32 = arith.constant 0 : i32
    %c0_i32_0 = arith.constant 0 : i32
    %c0_i32_1 = arith.constant 0 : i32
    return %c0_i32, %c0_i32_0 : i32, i32
  }
  func.func @transform_6(%arg0: i32) -> (i32, i32) {
    %c0_i32 = arith.constant 0 : i32
    %c0_i32_0 = arith.constant 0 : i32
    %c0_i32_1 = arith.constant 0 : i32
    return %c0_i32, %c0_i32_0 : i32, i32
  }
  func.func @transform_7(%arg0: i32) -> (i32, i32, i32) {
    %c0_i32 = arith.constant 0 : i32
    %c0_i32_0 = arith.constant 0 : i32
    %c0_i32_1 = arith.constant 0 : i32
    return %arg0, %c0_i32, %c0_i32_0 : i32, i32, i32
  }
  func.func @transform_8(%arg0: i32) -> (i32, i32, i32) {
    %c0_i32 = arith.constant 0 : i32
    %c0_i32_0 = arith.constant 0 : i32
    %c0_i32_1 = arith.constant 0 : i32
    return %arg0, %c0_i32, %c0_i32_0 : i32, i32, i32
  }
  func.func @transform_9(%arg0: i32) -> (i32, i32, i32) {
    %c0_i32 = arith.constant 0 : i32
    %c0_i32_0 = arith.constant 0 : i32
    %c0_i32_1 = arith.constant 0 : i32
    return %arg0, %c0_i32, %c0_i32_0 : i32, i32, i32
  }
  func.func @transform_10(%arg0: i32) -> (i32, i32, i32) {
    %c0_i32 = arith.constant 0 : i32
    %c0_i32_0 = arith.constant 0 : i32
    %c0_i32_1 = arith.constant 0 : i32
    return %arg0, %c0_i32, %c0_i32_0 : i32, i32, i32
  }
  func.func @transform_11(%arg0: i32) -> (i32, i32) {
    %c0_i32 = arith.constant 0 : i32
    %c0_i32_0 = arith.constant 0 : i32
    %c0_i32_1 = arith.constant 0 : i32
    return %c0_i32, %c0_i32_0 : i32, i32
  }
  func.func @transform_12(%arg0: i32) -> (i32, i32, i32) {
    %c0_i32 = arith.constant 0 : i32
    %c0_i32_0 = arith.constant 0 : i32
    %c0_i32_1 = arith.constant 0 : i32
    %c0_i32_2 = arith.constant 0 : i32
    return %c0_i32, %c0_i32_0, %c0_i32_1 : i32, i32, i32
  }
}

</mosaic_0001>

<llo_original>
// kernel: processor_forward.1
$region0: #{processor_forward.1}
  #allocation0 [shape = 'u32[]', space=smem, size = 0x4, offset = 0x4, fixed_abs, tag = 'smem constant byte address 0x4 - core index']
  #allocation1 [shape = 'u32[144,128]{1,0:T(1,128)}', space=vmem, size = 0x12000, scoped, tag = 'internal scratch']
  %s0 = inlined_call_operand.vmem [shape: f32[8,32], index: 0, kind: input, shape index: {}]
  %s1 = inlined_call_operand.vmem [shape: f32[3,8,32], index: 1, kind: input, shape index: {}]
  %s2 = inlined_call_operand.vmem [shape: f32[64,2], index: 2, kind: input, shape index: {}]
  %s3 = inlined_call_operand.vmem [shape: bf16[64,16], index: 3, kind: input, shape index: {}]
  %s4 = inlined_call_operand.vmem [shape: f32[64,16], index: 4, kind: input, shape index: {}]
  %s5 = inlined_call_operand.vmem [shape: f32[32,4], index: 5, kind: input, shape index: {}]
  %s6 = inlined_call_operand.vmem [shape: f32[4,32], index: 6, kind: input, shape index: {}]
  %s7 = inlined_call_operand.vmem [shape: bf16[2,32,384], index: 7, kind: input, shape index: {}]
  %s8 = inlined_call_operand.vmem [shape: bf16[2,16,96], index: 8, kind: input, shape index: {}]
  %s9 = inlined_call_operand.vmem [shape: bf16[2,64,32], index: 9, kind: input, shape index: {}]
  %s10 = inlined_call_operand.vmem [shape: f32[2,1,544], index: 10, kind: input, shape index: {}]
  %s11 = inlined_call_operand.hbm [shape: f32[8,32], index: 11, kind: output, shape index: {0}]
  %s12 = inlined_call_operand.hbm [shape: f32[3,8,32], index: 12, kind: output, shape index: {1}]
  %13 = xla_tuple %s11, %s12
  %s14 = sld [smem:[#allocation0]]
  $region89: #{processor_forward.1} parent=0
    _
  %s16 = ssub.s32 1, %s14
  %s17 = scalar_select 0, %s16, %s14
  $region1: #{processor_forward.1} parent=0
    #allocation2 [shape = 'u8[4096]{0}', space=vmem, size = 0x1000, scoped, tag = 'output window, operand 0, single buffered']
    #allocation3 [shape = 's32[2]{0}', space=sflag, size = 0x8, scoped, tag = 'scoped memory for processor_forward.1']
    #allocation4 [shape = 'u8[12288]{0}', space=vmem, size = 0x3000, scoped, tag = 'output window, operand 1, single buffered']
    #allocation5 [shape = 's32[1]{0}', space=sflag, size = 0x4, scoped, tag = 'scoped memory for processor_forward.1']
    %18 = vsyncpa [#allocation3], 0
    %19 = vsyncpa [#allocation5], 0
    loop: start=0, step=1, limit=4
    $region2: #{processor_forward.1} parent=1 // loop_pre_header
      _
    $region3: #{processor_forward.1} parent=1 // loop_header
      %s21 = sphi 0, %s25
      %p22 = scmp.ge.s32.totalorder %s21, 4
      %s29 = sphi 0, %s29
      %s31 = sphi 0, %s29
      %s32 = sphi 0, %s31
      %s46 = sphi 0, %s32
      %s50 = sphi 0, %s50
      %s52 = sphi 0, %s50
      %s53 = sphi 0, %s52
      %s67 = sphi 0, %s53
      %s71 = sphi 0, %s71
      %s73 = sphi 0, %s71
      %s74 = sphi 0, %s73
      %s88 = sphi 0, %s74
      %s92 = sphi 0, %s92
      %s94 = sphi 0, %s92
      %s95 = sphi 0, %s94
      %s109 = sphi 0, %s95
      %s113 = sphi 0, %s113
      %s115 = sphi 0, %s113
      %s116 = sphi 0, %s115
      %s130 = sphi 0, %s116
      %s134 = sphi 0, %s134
      %s136 = sphi 0, %s134
      %s137 = sphi 0, %s136
      %s151 = sphi 0, %s137
      %s155 = sphi 0, %s155
      %s157 = sphi 0, %s155
      %s158 = sphi 0, %s157
      %s172 = sphi 0, %s158
      %s178 = sphi 0, %s180
      %s181 = sphi 0, %s178
      %s182 = sphi 0, %s181
      %s198 = sphi 0, %s182
      %s204 = sphi 0, %s206
      %s207 = sphi 0, %s204
      %s208 = sphi 0, %s207
      %s224 = sphi 0, %s208
      %s230 = sphi 0, %s232
      %s233 = sphi 0, %s230
      %s234 = sphi 0, %s233
      %s250 = sphi 0, %s234
      %s256 = sphi 0, %s258
      %s259 = sphi 0, %s256
      %s260 = sphi 0, %s259
      %s276 = sphi 0, %s260
      %s280 = sphi 0, %s280
      %s282 = sphi 0, %s280
      %s283 = sphi 0, %s282
      %s297 = sphi 0, %s283
      %s301 = sphi 0, %s301
      %s303 = sphi 0, %s301
      %s304 = sphi 0, %s303
      %s318 = sphi 0, %s304
    $region4: #{processor_forward.1} parent=1 // loop_header_branch
      %24 = sbr.rel (%p22) target = $region8
    $region5: #{processor_forward.1} parent=1 // loop_body
      %s26 = ssub.s32 %s21, 1
      %s27 = ssub.s32 %s21, 2
      %s28 = sadd.s32 %s21, 1
      %s30 = sadd.s32 %s29, 1
      %p33 = scmp.eq.s32.totalorder %s21, 1
      %p34 = scmp.ne.s32.totalorder %s29, %s31
      %p35 = scmp.eq.s32.totalorder %s21, 0
      %p36 = por %p34, %p35
      %p37 = scmp.ne.s32.totalorder %s29, %s31
      %p38 = scmp.eq.s32.totalorder %s26, 1
      %p39 = por %p37, %p38
      %p40 = scmp.ne.s32.totalorder %s31, %s32
      %p41 = scmp.eq.s32.totalorder %s26, 0
      %p42 = por %p40, %p41
      %p43 = scmp.ne.s32.totalorder %s31, %s32
      %p44 = scmp.eq.s32.totalorder %s27, 1
      %p45 = por %p43, %p44
      %p47 = scmp.ne.s32.totalorder %s32, %s46
      %p48 = scmp.eq.s32.totalorder %s27, 0
      %p49 = por %p47, %p48
      %s51 = sadd.s32 %s50, 1
      %p54 = scmp.eq.s32.totalorder %s21, 1
      %p55 = scmp.ne.s32.totalorder %s50, %s52
      %p56 = scmp.eq.s32.totalorder %s21, 0
      %p57 = por %p55, %p56
      %p58 = scmp.ne.s32.totalorder %s50, %s52
      %p59 = scmp.eq.s32.totalorder %s26, 1
      %p60 = por %p58, %p59
      %p61 = scmp.ne.s32.totalorder %s52, %s53
      %p62 = scmp.eq.s32.totalorder %s26, 0
      %p63 = por %p61, %p62
      %p64 = scmp.ne.s32.totalorder %s52, %s53
      %p65 = scmp.eq.s32.totalorder %s27, 1
      %p66 = por %p64, %p65
      %p68 = scmp.ne.s32.totalorder %s53, %s67
      %p69 = scmp.eq.s32.totalorder %s27, 0
      %p70 = por %p68, %p69
      %s72 = sadd.s32 %s71, 1
      %p75 = scmp.eq.s32.totalorder %s21, 1
      %p76 = scmp.ne.s32.totalorder %s71, %s73
      %p77 = scmp.eq.s32.totalorder %s21, 0
      %p78 = por %p76, %p77
      %p79 = scmp.ne.s32.totalorder %s71, %s73
      %p80 = scmp.eq.s32.totalorder %s26, 1
      %p81 = por %p79, %p80
      %p82 = scmp.ne.s32.totalorder %s73, %s74
      %p83 = scmp.eq.s32.totalorder %s26, 0
      %p84 = por %p82, %p83
      %p85 = scmp.ne.s32.totalorder %s73, %s74
      %p86 = scmp.eq.s32.totalorder %s27, 1
      %p87 = por %p85, %p86
      %p89 = scmp.ne.s32.totalorder %s74, %s88
      %p90 = scmp.eq.s32.totalorder %s27, 0
      %p91 = por %p89, %p90
      %s93 = sadd.s32 %s92, 1
      %p96 = scmp.eq.s32.totalorder %s21, 1
      %p97 = scmp.ne.s32.totalorder %s92, %s94
      %p98 = scmp.eq.s32.totalorder %s21, 0
      %p99 = por %p97, %p98
      %p100 = scmp.ne.s32.totalorder %s92, %s94
      %p101 = scmp.eq.s32.totalorder %s26, 1
      %p102 = por %p100, %p101
      %p103 = scmp.ne.s32.totalorder %s94, %s95
      %p104 = scmp.eq.s32.totalorder %s26, 0
      %p105 = por %p103, %p104
      %p106 = scmp.ne.s32.totalorder %s94, %s95
      %p107 = scmp.eq.s32.totalorder %s27, 1
      %p108 = por %p106, %p107
      %p110 = scmp.ne.s32.totalorder %s95, %s109
      %p111 = scmp.eq.s32.totalorder %s27, 0
      %p112 = por %p110, %p111
      %s114 = sadd.s32 %s113, 1
      %p117 = scmp.eq.s32.totalorder %s21, 1
      %p118 = scmp.ne.s32.totalorder %s113, %s115
      %p119 = scmp.eq.s32.totalorder %s21, 0
      %p120 = por %p118, %p119
      %p121 = scmp.ne.s32.totalorder %s113, %s115
      %p122 = scmp.eq.s32.totalorder %s26, 1
      %p123 = por %p121, %p122
      %p124 = scmp.ne.s32.totalorder %s115, %s116
      %p125 = scmp.eq.s32.totalorder %s26, 0
      %p126 = por %p124, %p125
      %p127 = scmp.ne.s32.totalorder %s115, %s116
      %p128 = scmp.eq.s32.totalorder %s27, 1
      %p129 = por %p127, %p128
      %p131 = scmp.ne.s32.totalorder %s116, %s130
      %p132 = scmp.eq.s32.totalorder %s27, 0
      %p133 = por %p131, %p132
      %s135 = sadd.s32 %s134, 1
      %p138 = scmp.eq.s32.totalorder %s21, 1
      %p139 = scmp.ne.s32.totalorder %s134, %s136
      %p140 = scmp.eq.s32.totalorder %s21, 0
      %p141 = por %p139, %p140
      %p142 = scmp.ne.s32.totalorder %s134, %s136
      %p143 = scmp.eq.s32.totalorder %s26, 1
      %p144 = por %p142, %p143
      %p145 = scmp.ne.s32.totalorder %s136, %s137
      %p146 = scmp.eq.s32.totalorder %s26, 0
      %p147 = por %p145, %p146
      %p148 = scmp.ne.s32.totalorder %s136, %s137
      %p149 = scmp.eq.s32.totalorder %s27, 1
      %p150 = por %p148, %p149
      %p152 = scmp.ne.s32.totalorder %s137, %s151
      %p153 = scmp.eq.s32.totalorder %s27, 0
      %p154 = por %p152, %p153
      %s156 = sadd.s32 %s155, 1
      %p159 = scmp.eq.s32.totalorder %s21, 1
      %p160 = scmp.ne.s32.totalorder %s155, %s157
      %p161 = scmp.eq.s32.totalorder %s21, 0
      %p162 = por %p160, %p161
      %p163 = scmp.ne.s32.totalorder %s155, %s157
      %p164 = scmp.eq.s32.totalorder %s26, 1
      %p165 = por %p163, %p164
      %p166 = scmp.ne.s32.totalorder %s157, %s158
      %p167 = scmp.eq.s32.totalorder %s26, 0
      %p168 = por %p166, %p167
      %p169 = scmp.ne.s32.totalorder %s157, %s158
      %p170 = scmp.eq.s32.totalorder %s27, 1
      %p171 = por %p169, %p170
      %p173 = scmp.ne.s32.totalorder %s158, %s172
      %p174 = scmp.eq.s32.totalorder %s27, 0
      %p175 = por %p173, %p174
      %s176 = ssub.s32 %s21, %s28
      %p177 = scmp.eq.s32.totalorder %s176, 0
      %s179 = sadd.s32 %s178, 1
      %s180 = scalar_select %p177, %s178, %s179
      %p183 = pneg %p177
      %p184 = scmp.eq.s32.totalorder %s21, 1
      %p185 = por %p183, %p184
      %p186 = scmp.ne.s32.totalorder %s178, %s181
      %p187 = scmp.eq.s32.totalorder %s21, 0
      %p188 = por %p186, %p187
      %p189 = scmp.ne.s32.totalorder %s178, %s181
      %p190 = scmp.eq.s32.totalorder %s26, 1
      %p191 = por %p189, %p190
      %p192 = scmp.ne.s32.totalorder %s181, %s182
      %p193 = scmp.eq.s32.totalorder %s26, 0
      %p194 = por %p192, %p193
      %p195 = scmp.ne.s32.totalorder %s181, %s182
      %p196 = scmp.eq.s32.totalorder %s27, 1
      %p197 = por %p195, %p196
      %p199 = scmp.ne.s32.totalorder %s182, %s198
      %p200 = scmp.eq.s32.totalorder %s27, 0
      %p201 = por %p199, %p200
      %s202 = ssub.s32 %s21, %s28
      %p203 = scmp.eq.s32.totalorder %s202, 0
      %s205 = sadd.s32 %s204, 1
      %s206 = scalar_select %p203, %s204, %s205
      %p209 = pneg %p203
      %p210 = scmp.eq.s32.totalorder %s21, 1
      %p211 = por %p209, %p210
      %p212 = scmp.ne.s32.totalorder %s204, %s207
      %p213 = scmp.eq.s32.totalorder %s21, 0
      %p214 = por %p212, %p213
      %p215 = scmp.ne.s32.totalorder %s204, %s207
      %p216 = scmp.eq.s32.totalorder %s26, 1
      %p217 = por %p215, %p216
      %p218 = scmp.ne.s32.totalorder %s207, %s208
      %p219 = scmp.eq.s32.totalorder %s26, 0
      %p220 = por %p218, %p219
      %p221 = scmp.ne.s32.totalorder %s207, %s208
      %p222 = scmp.eq.s32.totalorder %s27, 1
      %p223 = por %p221, %p222
      %p225 = scmp.ne.s32.totalorder %s208, %s224
      %p226 = scmp.eq.s32.totalorder %s27, 0
      %p227 = por %p225, %p226
      %s228 = ssub.s32 %s21, %s28
      %p229 = scmp.eq.s32.totalorder %s228, 0
      %s231 = sadd.s32 %s230, 1
      %s232 = scalar_select %p229, %s230, %s231
      %p235 = pneg %p229
      %p236 = scmp.eq.s32.totalorder %s21, 1
      %p237 = por %p235, %p236
      %p238 = scmp.ne.s32.totalorder %s230, %s233
      %p239 = scmp.eq.s32.totalorder %s21, 0
      %p240 = por %p238, %p239
      %p241 = scmp.ne.s32.totalorder %s230, %s233
      %p242 = scmp.eq.s32.totalorder %s26, 1
      %p243 = por %p241, %p242
      %p244 = scmp.ne.s32.totalorder %s233, %s234
      %p245 = scmp.eq.s32.totalorder %s26, 0
      %p246 = por %p244, %p245
      %p247 = scmp.ne.s32.totalorder %s233, %s234
      %p248 = scmp.eq.s32.totalorder %s27, 1
      %p249 = por %p247, %p248
      %p251 = scmp.ne.s32.totalorder %s234, %s250
      %p252 = scmp.eq.s32.totalorder %s27, 0
      %p253 = por %p251, %p252
      %s254 = ssub.s32 %s21, %s28
      %p255 = scmp.eq.s32.totalorder %s254, 0
      %s257 = sadd.s32 %s256, 1
      %s258 = scalar_select %p255, %s256, %s257
      %p261 = pneg %p255
      %p262 = scmp.eq.s32.totalorder %s21, 1
      %p263 = por %p261, %p262
      %p264 = scmp.ne.s32.totalorder %s256, %s259
      %p265 = scmp.eq.s32.totalorder %s21, 0
      %p266 = por %p264, %p265
      %p267 = scmp.ne.s32.totalorder %s256, %s259
      %p268 = scmp.eq.s32.totalorder %s26, 1
      %p269 = por %p267, %p268
      %p270 = scmp.ne.s32.totalorder %s259, %s260
      %p271 = scmp.eq.s32.totalorder %s26, 0
      %p272 = por %p270, %p271
      %p273 = scmp.ne.s32.totalorder %s259, %s260
      %p274 = scmp.eq.s32.totalorder %s27, 1
      %p275 = por %p273, %p274
      %p277 = scmp.ne.s32.totalorder %s260, %s276
      %p278 = scmp.eq.s32.totalorder %s27, 0
      %p279 = por %p277, %p278
      %s281 = sadd.s32 %s280, 1
      %p284 = scmp.eq.s32.totalorder %s21, 1
      %p285 = scmp.ne.s32.totalorder %s280, %s282
      %p286 = scmp.eq.s32.totalorder %s21, 0
      %p287 = por %p285, %p286
      %p288 = scmp.ne.s32.totalorder %s280, %s282
      %p289 = scmp.eq.s32.totalorder %s26, 1
      %p290 = por %p288, %p289
      %p291 = scmp.ne.s32.totalorder %s282, %s283
      %p292 = scmp.eq.s32.totalorder %s26, 0
      %p293 = por %p291, %p292
      %p294 = scmp.ne.s32.totalorder %s282, %s283
      %p295 = scmp.eq.s32.totalorder %s27, 1
      %p296 = por %p294, %p295
      %p298 = scmp.ne.s32.totalorder %s283, %s297
      %p299 = scmp.eq.s32.totalorder %s27, 0
      %p300 = por %p298, %p299
      %s302 = sadd.s32 %s301, 1
      %p305 = scmp.eq.s32.totalorder %s21, 1
      %p306 = scmp.ne.s32.totalorder %s301, %s303
      %p307 = scmp.eq.s32.totalorder %s21, 0
      %p308 = por %p306, %p307
      %p309 = scmp.ne.s32.totalorder %s301, %s303
      %p310 = scmp.eq.s32.totalorder %s26, 1
      %p311 = por %p309, %p310
      %p312 = scmp.ne.s32.totalorder %s303, %s304
      %p313 = scmp.eq.s32.totalorder %s26, 0
      %p314 = por %p312, %p313
      %p315 = scmp.ne.s32.totalorder %s303, %s304
      %p316 = scmp.eq.s32.totalorder %s27, 1
      %p317 = por %p315, %p316
      %p319 = scmp.ne.s32.totalorder %s304, %s318
      %p320 = scmp.eq.s32.totalorder %s27, 0
      %p321 = por %p319, %p320
      %p322 = scmp.le.s32.totalorder 1, %s21
      %p323 = scmp.lt.s32.totalorder %s21, 3
      %p324 = pnand %p322, %p323
      %p325 = pneg %p324
      // Predicated region
      $region9: #{processor_forward.1} parent=5 // pred_check
        _
      $region10: #{processor_forward.1} parent=5 // pred_check_branch
        %327 = sbr.rel (%p324) target = $region12
      $region11: #{processor_forward.1} parent=5 // pred_region
        %s328 = ssub.s32 %s21, 1
        // Predicated region
        $region13: #{processor_forward.1} parent=11 // pred_check
          %p329 = pneg %p42
        $region14: #{processor_forward.1} parent=11 // pred_check_branch
          %331 = sbr.rel (%p329) target = $region16
        $region15: #{processor_forward.1} parent=11 // pred_region
          _
        $region16: #{processor_forward.1} parent=11 // pred_fallthru
          _
        // Predicated region
        $region17: #{processor_forward.1} parent=11 // pred_check
          %p332 = pneg %p63
        $region18: #{processor_forward.1} parent=11 // pred_check_branch
          %334 = sbr.rel (%p332) target = $region20
        $region19: #{processor_forward.1} parent=11 // pred_region
          _
        $region20: #{processor_forward.1} parent=11 // pred_fallthru
          _
        // Predicated region
        $region21: #{processor_forward.1} parent=11 // pred_check
          %p335 = pneg %p84
        $region22: #{processor_forward.1} parent=11 // pred_check_branch
          %337 = sbr.rel (%p335) target = $region24
        $region23: #{processor_forward.1} parent=11 // pred_region
          _
        $region24: #{processor_forward.1} parent=11 // pred_fallthru
          _
        // Predicated region
        $region25: #{processor_forward.1} parent=11 // pred_check
          %p338 = pneg %p105
        $region26: #{processor_forward.1} parent=11 // pred_check_branch
          %340 = sbr.rel (%p338) target = $region28
        $region27: #{processor_forward.1} parent=11 // pred_region
          _
        $region28: #{processor_forward.1} parent=11 // pred_fallthru
          _
        // Predicated region
        $region29: #{processor_forward.1} parent=11 // pred_check
          %p341 = pneg %p126
        $region30: #{processor_forward.1} parent=11 // pred_check_branch
          %343 = sbr.rel (%p341) target = $region32
        $region31: #{processor_forward.1} parent=11 // pred_region
          _
        $region32: #{processor_forward.1} parent=11 // pred_fallthru
          _
        // Predicated region
        $region33: #{processor_forward.1} parent=11 // pred_check
          %p344 = pneg %p147
        $region34: #{processor_forward.1} parent=11 // pred_check_branch
          %346 = sbr.rel (%p344) target = $region36
        $region35: #{processor_forward.1} parent=11 // pred_region
          _
        $region36: #{processor_forward.1} parent=11 // pred_fallthru
          _
        // Predicated region
        $region37: #{processor_forward.1} parent=11 // pred_check
          %p347 = pneg %p168
        $region38: #{processor_forward.1} parent=11 // pred_check_branch
          %349 = sbr.rel (%p347) target = $region40
        $region39: #{processor_forward.1} parent=11 // pred_region
          _
        $region40: #{processor_forward.1} parent=11 // pred_fallthru
          _
      $region12: #{processor_forward.1} parent=5 // pred_fallthru
        _
      %p350 = scmp.lt.s32.totalorder %s21, 2
      // Predicated region
      $region41: #{processor_forward.1} parent=5 // pred_check
        %p351 = pneg %p350
      $region42: #{processor_forward.1} parent=5 // pred_check_branch
        %353 = sbr.rel (%p351) target = $region44
      $region43: #{processor_forward.1} parent=5 // pred_region
        // Predicated region
        $region45: #{processor_forward.1} parent=43 // pred_check
          %p354 = pneg %p188
        $region46: #{processor_forward.1} parent=43 // pred_check_branch
          %356 = sbr.rel (%p354) target = $region48
        $region47: #{processor_forward.1} parent=43 // pred_region
          %p357 = scmp.lt.s32.totalorder %s21, 1
          %s358 = scalar_select %p357, %s21, 1
          %s359 = smul.addr %s358, 12
          %s360 = smul.addr %s359, 4
          %s361 = scalar_lea.vmem %s7, %s360
        $region48: #{processor_forward.1} parent=43 // pred_fallthru
          _
        // Predicated region
        $region49: #{processor_forward.1} parent=43 // pred_check
          %p362 = pneg %p214
        $region50: #{processor_forward.1} parent=43 // pred_check_branch
          %364 = sbr.rel (%p362) target = $region52
        $region51: #{processor_forward.1} parent=43 // pred_region
          %p365 = scmp.lt.s32.totalorder %s21, 1
          %s366 = scalar_select %p365, %s21, 1
          %s367 = smul.addr %s366, 2
          %s368 = smul.addr %s367, 4
          %s369 = scalar_lea.vmem %s8, %s368
        $region52: #{processor_forward.1} parent=43 // pred_fallthru
          _
        // Predicated region
        $region53: #{processor_forward.1} parent=43 // pred_check
          %p370 = pneg %p240
        $region54: #{processor_forward.1} parent=43 // pred_check_branch
          %372 = sbr.rel (%p370) target = $region56
        $region55: #{processor_forward.1} parent=43 // pred_region
          %p373 = scmp.lt.s32.totalorder %s21, 1
          %s374 = scalar_select %p373, %s21, 1
          %s375 = smul.addr %s374, 8
          %s376 = smul.addr %s375, 4
          %s377 = scalar_lea.vmem %s9, %s376
        $region56: #{processor_forward.1} parent=43 // pred_fallthru
          _
        // Predicated region
        $region57: #{processor_forward.1} parent=43 // pred_check
          %p378 = pneg %p266
        $region58: #{processor_forward.1} parent=43 // pred_check_branch
          %380 = sbr.rel (%p378) target = $region60
        $region59: #{processor_forward.1} parent=43 // pred_region
          %p381 = scmp.lt.s32.totalorder %s21, 1
          %s382 = scalar_select %p381, %s21, 1
          %s383 = smul.addr %s382, 5
          %s384 = scalar_lea.vmem %s10, %s383
        $region60: #{processor_forward.1} parent=43 // pred_fallthru
          _
      $region44: #{processor_forward.1} parent=5 // pred_fallthru
        _
      %p385 = scmp.le.s32.totalorder 1, %s21
      %p386 = scmp.lt.s32.totalorder %s21, 3
      %p387 = pnand %p385, %p386
      %p388 = pneg %p387
      // Predicated region
      $region61: #{processor_forward.1} parent=5 // pred_check
        _
      $region62: #{processor_forward.1} parent=5 // pred_check_branch
        %390 = sbr.rel (%p387) target = $region64
      $region63: #{processor_forward.1} parent=5 // pred_region
        %s391 = ssub.s32 %s21, 1
        %p392 = pneg %p42
        %p393 = pneg %p39
        %p394 = pneg %p63
        %p395 = pneg %p60
        %p396 = pneg %p84
        %p397 = pneg %p81
        %p398 = pneg %p105
        %p399 = pneg %p102
        %p400 = pneg %p126
        %p401 = pneg %p123
        %p402 = pneg %p147
        %p403 = pneg %p144
        %p404 = pneg %p168
        %p405 = pneg %p165
        %p406 = scmp.lt.s32.totalorder %s26, 1
        %s407 = scalar_select %p406, %s26, 1
        %s408 = smul.addr %s407, 12
        %s409 = smul.addr %s408, 4
        %s410 = scalar_lea.vmem %s7, %s409
        %p411 = pneg %p194
        %p412 = pneg %p191
        %p413 = scmp.lt.s32.totalorder %s26, 1
        %s414 = scalar_select %p413, %s26, 1
        %s415 = smul.addr %s414, 2
        %s416 = smul.addr %s415, 4
        %s417 = scalar_lea.vmem %s8, %s416
        %p418 = pneg %p220
        %p419 = pneg %p217
        %p420 = scmp.lt.s32.totalorder %s26, 1
        %s421 = scalar_select %p420, %s26, 1
        %s422 = smul.addr %s421, 8
        %s423 = smul.addr %s422, 4
        %s424 = scalar_lea.vmem %s9, %s423
        %p425 = pneg %p246
        %p426 = pneg %p243
        %p427 = scmp.lt.s32.totalorder %s26, 1
        %s428 = scalar_select %p427, %s26, 1
        %s429 = smul.addr %s428, 5
        %s430 = scalar_lea.vmem %s10, %s429
        %p431 = pneg %p272
        %p432 = pneg %p269
        %p433 = pneg %p293
        %p434 = pneg %p290
        %p435 = pneg %p314
        %p436 = pneg %p311
        %p437 = scmp.lt.s32.totalorder %s26, 1
        %s438 = scalar_select %p437, %s26, 1
        %s439 = smul.addr %s438, 12
        %s440 = smul.addr %s439, 4
        %s441 = scalar_lea.vmem %s7, %s440
        %p442 = scmp.lt.s32.totalorder %s26, 1
        %s443 = scalar_select %p442, %s26, 1
        %s444 = smul.addr %s443, 2
        %s445 = smul.addr %s444, 4
        %s446 = scalar_lea.vmem %s8, %s445
        %p447 = scmp.lt.s32.totalorder %s26, 1
        %s448 = scalar_select %p447, %s26, 1
        %s449 = smul.addr %s448, 8
        %s450 = smul.addr %s449, 4
        %s451 = scalar_lea.vmem %s9, %s450
        %p452 = scmp.lt.s32.totalorder %s26, 1
        %s453 = scalar_select %p452, %s26, 1
        %s454 = smul.addr %s453, 5
        %s455 = scalar_lea.vmem %s10, %s454
        %p457 = scmp.eq.s32.totalorder %s26, 0
        // Predicated region
        $region65: #{processor_forward.1} parent=63 // pred_check
          %p458 = pneg %p457
        $region66: #{processor_forward.1} parent=63 // pred_check_branch
          %460 = sbr.rel (%p458) target = $region68
        $region67: #{processor_forward.1} parent=63 // pred_region
          %v461 = vld [vmem:[%s0] sm:$0xff]
          %vm462 = vcmask 261120
          %463 = vst.msk [vmem:[#allocation2] sm:$0xff] %vm462, %v461
          %v464 = vld [vmem:[%s1] sm:$0xff]
          %v465 = vld [vmem:[%s1 + $0x8] sm:$0xff]
          %v466 = vld [vmem:[%s1 + $0x10] sm:$0xff]
          %467 = vst.msk [vmem:[#allocation4] sm:$0xff] %vm462, %v464
          %468 = vst.msk [vmem:[#allocation4 + $0x8] sm:$0xff] %vm462, %v465
          %469 = vst.msk [vmem:[#allocation4 + $0x10] sm:$0xff] %vm462, %v466
        $region68: #{processor_forward.1} parent=63 // pred_fallthru
          _
        %v470 = vld [vmem:[#allocation2] sm:$0xff]
        %v471 = vld [vmem:[#allocation4] sm:$0xff]
        %v472 = vld [vmem:[#allocation4 + $0x8] sm:$0xff]
        %v473 = vld [vmem:[#allocation4 + $0x10] sm:$0xff]
        %v474 = vld [vmem:[%s2] sm:$0xff]
        %v475 = vld [vmem:[%s2 + $0x8] sm:$0xff]
        %v476 = vld [vmem:[%s2 + $0x10] sm:$0xff]
        %v477 = vld [vmem:[%s2 + $0x18] sm:$0xff]
        %v478 = vld [vmem:[%s2 + $0x20] sm:$0xff]
        %v479 = vld [vmem:[%s2 + $0x28] sm:$0xff]
        %v480 = vld [vmem:[%s2 + $0x30] sm:$0xff]
        %v481 = vld [vmem:[%s2 + $0x38] sm:$0xff]
        %v482 = vld [vmem:[%s441] sm:$0xf]
        %v483 = vld [vmem:[%s441 + $0xc] sm:$0xf]
        %v484 = vld [vmem:[%s441 + $0x18] sm:$0xf]
        %v485 = vld [vmem:[%s441 + $0x24] sm:$0xf]
        %v486 = vld [vmem:[%s441 + $0x4] sm:$0xf]
        %v487 = vld [vmem:[%s441 + $0x10] sm:$0xf]
        %v488 = vld [vmem:[%s441 + $0x1c] sm:$0xf]
        %v489 = vld [vmem:[%s441 + $0x28] sm:$0xf]
        %v490 = vld [vmem:[%s441 + $0x4] sm:$0xff]
        %v491 = vld [vmem:[%s441 + $0x10] sm:$0xff]
        %v492 = vld [vmem:[%s441 + $0x1c] sm:$0xff]
        %v493 = vld [vmem:[%s441 + $0x28] sm:$0xff]
        %v494 = vld [vmem:[%s441 + $0x8] sm:$0xf]
        %v495 = vld [vmem:[%s441 + $0x14] sm:$0xf]
        %v496 = vld [vmem:[%s441 + $0x20] sm:$0xf]
        %v497 = vld [vmem:[%s441 + $0x2c] sm:$0xf]
        %v498 = vld [vmem:[%s446] sm:$0xf]
        %v499 = vld [vmem:[%s446 + $0x4] sm:$0xf]
        %v500 = vld [vmem:[%s451] sm:$0xf]
        %v501 = vld [vmem:[%s451 + $0x4] sm:$0xf]
        %v502 = vld [vmem:[%s451 + $0x8] sm:$0xf]
        %v503 = vld [vmem:[%s451 + $0xc] sm:$0xf]
        %v504 = vld [vmem:[%s451 + $0x10] sm:$0xf]
        %v505 = vld [vmem:[%s451 + $0x14] sm:$0xf]
        %v506 = vld [vmem:[%s451 + $0x18] sm:$0xf]
        %v507 = vld [vmem:[%s451 + $0x1c] sm:$0xf]
        %v508 = vld [vmem:[%s455] sm:$0x1]
        %v509 = vld [vmem:[%s455] sm:$0x3]
        %v510 = vld [vmem:[%s455 + $0x1] sm:$0x3]
        %v511 = vld [vmem:[%s455 + $0x2] sm:$0x1]
        %v512 = vld [vmem:[%s455 + $0x3] sm:$0x1]
        %v513 = vld [vmem:[%s455 + $0x4] sm:$0x1]
        %vm514 = vcmask 261120
        %v515 = vsel %vm514, %v470, 0.0
        %516 = vadd.xlane.f32.xlu0 %v515
        %v517 = vpop.xlane.xlu0 %516
        %v518 = vrcp.pop 32.0
        %v519 = vmul.f32 %v517, %v518
        %v520 = vsub.f32 %v470, %v519
        %v521 = vmul.f32 %v520, %v520
        %v522 = vsel %vm514, %v521, 0.0
        %523 = vadd.xlane.f32.xlu0 %v522
        %v524 = vpop.xlane.xlu0 %523
        %v525 = vmul.f32 %v524, %v518
        %v526 = vadd.f32 %v525, 1e-05
        %v527 = vrsqrt.pop %v526
        %v528 = vmul.f32 %v520, %v527
        %v530 = vlaneseq
        %v531 = vshrl.u32 %v530, 7
        %v532 = vsub.s32 0, %v531
        %v533 = vrot.slane %v508, %v532
        %v535 = vmul.f32 %v528, %v533
        %536 = vrot.lane.b32.xlu0 %v533, 96
        %v537 = vpop.permute.xlu0 %536
        %v539 = vadd.f32 %v535, %v537
        %v540 = vpack.c.bf16 %v539, %v539
        %v542 = vlaneseq
        %v543 = vshrl.u32 %v542, 7
        %v544 = vsub.s32 0, %v543
        %v545 = vrot.slane %v509, %v544
        %v546 = vlaneseq
        %v547 = vshrl.u32 %v546, 7
        %v548 = vsub.s32 1, %v547
        %v549 = vrot.slane %v509, %v548
        %v554 = vunpack.c.l.b16 %v482
        %v555 = vunpack.c.l.b16 %v483
        %v556 = vunpack.c.l.b16 %v484
        %v557 = vunpack.c.l.b16 %v485
        %v558 = vpack.c.b16 %v555, %v554
        %v559 = vpack.c.b16 %v557, %v556
        %562 = vrot.lane.b32.xlu0 %v545, 64
        %v563 = vpop.permute.xlu0 %562
        %564 = vrot.lane.b32.xlu0 %v549, 64
        %v565 = vpop.permute.xlu0 %564
        %vm566 = vcmask 523264
        %v567 = vsel %vm566, %v563, %v565
        %v570 = vsel %vm514, %v540, 0
        %572 = vmatprep.subr.bf16.mxu0 0
        %573 = vmatpush1.bf16.msra.mxu0 0
        %574 = vmatprep.subr.bf16.mxu0 0
        %575 = vmatpush1.bf16.msra.mxu0 0
        %576 = vmatprep.subr.bf16.mxu0 0
        %577 = vmatpush1.bf16.msra.mxu0 0
        %578 = vmatprep.subr.bf16.mxu0 0
        %579 = vmatpush1.bf16.msra.mxu0 0
        %580 = vmatprep.subr.bf16.mxu0 0
        %581 = vmatpush1.bf16.msra.mxu0 0
        %582 = vmatprep.subr.bf16.mxu0 0
        %583 = vmatpush1.bf16.msra.mxu0 0
        %584 = vmatprep.subr.bf16.mxu0 0
        %585 = vmatpush1.bf16.msra.mxu0 %v559
        %586 = vmatprep.subr.bf16.mxu0 0
        %587 = vmatpush1.bf16.msra.mxu0 %v558
        %588 = vmatprep.subr.bf16.mxu0 0
        %589 = vmatpush2.bf16.msra.mxu0 0
        %590 = vmatprep.subr.bf16.mxu0 0
        %591 = vmatpush2.bf16.msra.mxu0 0
        %592 = vmatprep.subr.bf16.mxu0 0
        %593 = vmatpush2.bf16.msra.mxu0 0
        %594 = vmatprep.subr.bf16.mxu0 0
        %595 = vmatpush2.bf16.msra.mxu0 0
        %596 = vmatprep.subr.bf16.mxu0 0
        %597 = vmatpush2.bf16.msra.mxu0 0
        %598 = vmatprep.subr.bf16.mxu0 0
        %599 = vmatpush2.bf16.msra.mxu0 0
        %600 = vmatprep.subr.bf16.mxu0 0
        %601 = vmatpush2.bf16.msra.mxu0 0
        %602 = vmatprep.subr.bf16.mxu0 0
        %603 = vmatpush2.bf16.msra.mxu0 0
        %604 = vmatprep.mubr.bf16.mxu0 0
        %605 = vmatmul.mubr.bf16.gmra.mxu0 %v570
        %v606 = vpop.f32.mrf.mxu0
        %v607 = vadd.f32 %v567, %v606
        %v608 = vpop.f32.mrf.mxu0
        %v609 = vpop.f32.mrf.mxu0
        %v610 = vpop.f32.mrf.mxu0
        %611 = vdwg.mxu0
        %v612 = vpack.c.bf16 %v472, %v471
        %v613 = vpack.c.bf16 %v473, %v473
        %v618 = vunpack.c.l.b16 %v486
        %v619 = vunpack.c.l.b16 %v487
        %v620 = vunpack.c.l.b16 %v488
        %v621 = vunpack.c.l.b16 %v489
        %v622 = vpack.c.b16 %v619, %v618
        %v623 = vpack.c.b16 %v621, %v620
        %v627 = vsel %vm514, %v612, 0
        %v630 = vsel %vm514, %v613, 0
        %632 = vmatprep.subr.bf16.mxu0 0
        %633 = vmatpush1.bf16.msra.mxu0 0
        %634 = vmatprep.subr.bf16.mxu0 0
        %635 = vmatpush1.bf16.msra.mxu0 0
        %636 = vmatprep.subr.bf16.mxu0 0
        %637 = vmatpush1.bf16.msra.mxu0 0
        %638 = vmatprep.subr.bf16.mxu0 0
        %639 = vmatpush1.bf16.msra.mxu0 0
        %640 = vmatprep.subr.bf16.mxu0 0
        %641 = vmatpush1.bf16.msra.mxu0 0
        %642 = vmatprep.subr.bf16.mxu0 0
        %643 = vmatpush1.bf16.msra.mxu0 0
        %644 = vmatprep.subr.bf16.mxu0 0
        %645 = vmatpush1.bf16.msra.mxu0 %v623
        %646 = vmatprep.subr.bf16.mxu0 0
        %647 = vmatpush1.bf16.msra.mxu0 %v622
        %648 = vmatprep.subr.bf16.mxu0 0
        %649 = vmatpush2.bf16.msra.mxu0 0
        %650 = vmatprep.subr.bf16.mxu0 0
        %651 = vmatpush2.bf16.msra.mxu0 0
        %652 = vmatprep.subr.bf16.mxu0 0
        %653 = vmatpush2.bf16.msra.mxu0 0
        %654 = vmatprep.subr.bf16.mxu0 0
        %655 = vmatpush2.bf16.msra.mxu0 0
        %656 = vmatprep.subr.bf16.mxu0 0
        %657 = vmatpush2.bf16.msra.mxu0 0
        %658 = vmatprep.subr.bf16.mxu0 0
        %659 = vmatpush2.bf16.msra.mxu0 0
        %660 = vmatprep.subr.bf16.mxu0 0
        %661 = vmatpush2.bf16.msra.mxu0 0
        %662 = vmatprep.subr.bf16.mxu0 0
        %663 = vmatpush2.bf16.msra.mxu0 0
        %664 = vmatprep.mubr.bf16.mxu0 0
        %665 = vmatmul.mubr.bf16.gmra.mxu0 %v627
        %v666 = vpop.f32.mrf.mxu0
        %v667 = vadd.f32 0.0, %v666
        %v668 = vpop.f32.mrf.mxu0
        %v669 = vpop.f32.mrf.mxu0
        %v670 = vadd.f32 0.0, %v669
        %v671 = vpop.f32.mrf.mxu0
        %672 = vmatprep.mubr.bf16.mxu0 0
        %673 = vmatmul.mubr.bf16.gmra.mxu0 %v630
        %v674 = vpop.f32.mrf.mxu0
        %v675 = vadd.f32 0.0, %v674
        %v676 = vpop.f32.mrf.mxu0
        %v677 = vpop.f32.mrf.mxu0
        %v678 = vpop.f32.mrf.mxu0
        %679 = vdwg.mxu0
        %683 = vrot.lane.b32.xlu0 %v667, 96
        %v684 = vpop.permute.xlu0 %683
        %685 = vrot.lane.b32.xlu0 %v670, 96
        %v686 = vpop.permute.xlu0 %685
        %687 = vrot.lane.b32.xlu0 %v675, 96
        %v688 = vpop.permute.xlu0 %687
        %v692 = vmul.f32 %v667, %v684
        %v693 = vmul.f32 %v670, %v686
        %v694 = vmul.f32 %v675, %v688
        %v695 = vadd.f32 %v692, %v693
        %v696 = vadd.f32 %v695, %v694
        %v697 = vld [vmem:[%s3] sm:$0xf]
        %v698 = vld [vmem:[%s3 + $0x4] sm:$0xf]
        %v699 = vld [vmem:[%s3 + $0x8] sm:$0xf]
        %v700 = vld [vmem:[%s3 + $0xc] sm:$0xf]
        %v701 = vld [vmem:[%s3 + $0x10] sm:$0xf]
        %v702 = vld [vmem:[%s3 + $0x14] sm:$0xf]
        %v703 = vld [vmem:[%s3 + $0x18] sm:$0xf]
        %v704 = vld [vmem:[%s3 + $0x1c] sm:$0xf]
        %v706 = vlaneseq
        %v707 = vshrl.u32 %v706, 7
        %v708 = vsub.s32 0, %v707
        %v709 = vrot.slane %v510, %v708
        %v710 = vlaneseq
        %v711 = vshrl.u32 %v710, 7
        %v712 = vsub.s32 1, %v711
        %v713 = vrot.slane %v510, %v712
        %v722 = vunpack.c.l.b16 %v697
        %v723 = vunpack.c.l.b16 %v698
        %v724 = vunpack.c.l.b16 %v699
        %v725 = vunpack.c.l.b16 %v700
        %v726 = vunpack.c.l.b16 %v701
        %v727 = vunpack.c.l.b16 %v702
        %v728 = vunpack.c.l.b16 %v703
        %v729 = vunpack.c.l.b16 %v704
        %v730 = vpack.c.b16 %v723, %v722
        %v731 = vpack.c.b16 %v725, %v724
        %v732 = vpack.c.b16 %v727, %v726
        %v733 = vpack.c.b16 %v729, %v728
        %v736 = vunpack.c.l.b16 %v498
        %v737 = vunpack.c.l.b16 %v499
        %v738 = vpack.c.b16 %v737, %v736
        %740 = vrot.lane.b32.xlu0 %v709, 64
        %v741 = vpop.permute.xlu0 %740
        %742 = vrot.lane.b32.xlu0 %v713, 64
        %v743 = vpop.permute.xlu0 %742
        %v744 = vsel %vm566, %v741, %v743
        %vm746 = vcmask 130048
        %v748 = vsel %vm746, %v730, 0
        %v751 = vsel %vm746, %v731, 0
        %v754 = vsel %vm746, %v732, 0
        %v757 = vsel %vm746, %v733, 0
        %759 = vmatprep.subr.bf16.mxu0 0
        %760 = vmatpush1.bf16.msra.mxu0 0
        %761 = vmatprep.subr.bf16.mxu0 0
        %762 = vmatpush1.bf16.msra.mxu0 0
        %763 = vmatprep.subr.bf16.mxu0 0
        %764 = vmatpush1.bf16.msra.mxu0 0
        %765 = vmatprep.subr.bf16.mxu0 0
        %766 = vmatpush1.bf16.msra.mxu0 0
        %767 = vmatprep.subr.bf16.mxu0 0
        %768 = vmatpush1.bf16.msra.mxu0 0
        %769 = vmatprep.subr.bf16.mxu0 0
        %770 = vmatpush1.bf16.msra.mxu0 0
        %771 = vmatprep.subr.bf16.mxu0 0
        %772 = vmatpush1.bf16.msra.mxu0 0
        %773 = vmatprep.subr.bf16.mxu0 0
        %774 = vmatpush1.bf16.msra.mxu0 %v738
        %775 = vmatprep.subr.bf16.mxu0 0
        %776 = vmatpush2.bf16.msra.mxu0 0
        %777 = vmatprep.subr.bf16.mxu0 0
        %778 = vmatpush2.bf16.msra.mxu0 0
        %779 = vmatprep.subr.bf16.mxu0 0
        %780 = vmatpush2.bf16.msra.mxu0 0
        %781 = vmatprep.subr.bf16.mxu0 0
        %782 = vmatpush2.bf16.msra.mxu0 0
        %783 = vmatprep.subr.bf16.mxu0 0
        %784 = vmatpush2.bf16.msra.mxu0 0
        %785 = vmatprep.subr.bf16.mxu0 0
        %786 = vmatpush2.bf16.msra.mxu0 0
        %787 = vmatprep.subr.bf16.mxu0 0
        %788 = vmatpush2.bf16.msra.mxu0 0
        %789 = vmatprep.subr.bf16.mxu0 0
        %790 = vmatpush2.bf16.msra.mxu0 0
        %791 = vmatprep.mubr.bf16.mxu0 0
        %792 = vmatmul.mubr.bf16.gmra.mxu0 %v748
        %v793 = vpop.f32.mrf.mxu0
        %v794 = vadd.f32 %v744, %v793
        %v795 = vpop.f32.mrf.mxu0
        %v796 = vpop.f32.mrf.mxu0
        %v797 = vadd.f32 %v744, %v796
        %v798 = vpop.f32.mrf.mxu0
        %799 = vmatprep.mubr.bf16.mxu0 0
        %800 = vmatmul.mubr.bf16.gmra.mxu0 %v751
        %v801 = vpop.f32.mrf.mxu0
        %v802 = vadd.f32 %v744, %v801
        %v803 = vpop.f32.mrf.mxu0
        %v804 = vpop.f32.mrf.mxu0
        %v805 = vadd.f32 %v744, %v804
        %v806 = vpop.f32.mrf.mxu0
        %807 = vmatprep.mubr.bf16.mxu0 0
        %808 = vmatmul.mubr.bf16.gmra.mxu0 %v754
        %v809 = vpop.f32.mrf.mxu0
        %v810 = vadd.f32 %v744, %v809
        %v811 = vpop.f32.mrf.mxu0
        %v812 = vpop.f32.mrf.mxu0
        %v813 = vadd.f32 %v744, %v812
        %v814 = vpop.f32.mrf.mxu0
        %815 = vmatprep.mubr.bf16.mxu0 0
        %816 = vmatmul.mubr.bf16.gmra.mxu0 %v757
        %v817 = vpop.f32.mrf.mxu0
        %v818 = vadd.f32 %v744, %v817
        %v819 = vpop.f32.mrf.mxu0
        %v820 = vpop.f32.mrf.mxu0
        %v821 = vadd.f32 %v744, %v820
        %v822 = vpop.f32.mrf.mxu0
        %823 = vdwg.mxu0
        %v824 = vxor.u32 %v794, 2147483648
        %v825 = vxor.u32 %v797, 2147483648
        %v826 = vxor.u32 %v802, 2147483648
        %v827 = vxor.u32 %v805, 2147483648
        %v828 = vxor.u32 %v810, 2147483648
        %v829 = vxor.u32 %v813, 2147483648
        %v830 = vxor.u32 %v818, 2147483648
        %v831 = vxor.u32 %v821, 2147483648
        %v832 = vmul.f32 %v824, 1.442695
        %v833 = vpow.pop %v832
        %v834 = vmul.f32 %v825, 1.442695
        %v835 = vpow.pop %v834
        %v836 = vmul.f32 %v826, 1.442695
        %v837 = vpow.pop %v836
        %v838 = vmul.f32 %v827, 1.442695
        %v839 = vpow.pop %v838
        %v840 = vmul.f32 %v828, 1.442695
        %v841 = vpow.pop %v840
        %v842 = vmul.f32 %v829, 1.442695
        %v843 = vpow.pop %v842
        %v844 = vmul.f32 %v830, 1.442695
        %v845 = vpow.pop %v844
        %v846 = vmul.f32 %v831, 1.442695
        %v847 = vpow.pop %v846
        %v848 = vadd.f32 %v833, 1.0
        %v849 = vadd.f32 %v835, 1.0
        %v850 = vadd.f32 %v837, 1.0
        %v851 = vadd.f32 %v839, 1.0
        %v852 = vadd.f32 %v841, 1.0
        %v853 = vadd.f32 %v843, 1.0
        %v854 = vadd.f32 %v845, 1.0
        %v855 = vadd.f32 %v847, 1.0
        %v856 = vrcp.pop %v848
        %v857 = vmul.f32 1.0, %v856
        %v858 = vrcp.pop %v849
        %v859 = vmul.f32 1.0, %v858
        %v860 = vrcp.pop %v850
        %v861 = vmul.f32 1.0, %v860
        %v862 = vrcp.pop %v851
        %v863 = vmul.f32 1.0, %v862
        %v864 = vrcp.pop %v852
        %v865 = vmul.f32 1.0, %v864
        %v866 = vrcp.pop %v853
        %v867 = vmul.f32 1.0, %v866
        %v868 = vrcp.pop %v854
        %v869 = vmul.f32 1.0, %v868
        %v870 = vrcp.pop %v855
        %v871 = vmul.f32 1.0, %v870
        %v872 = vmul.f32 %v794, %v857
        %v873 = vmul.f32 %v797, %v859
        %v874 = vmul.f32 %v802, %v861
        %v875 = vmul.f32 %v805, %v863
        %v876 = vmul.f32 %v810, %v865
        %v877 = vmul.f32 %v813, %v867
        %v878 = vmul.f32 %v818, %v869
        %v879 = vmul.f32 %v821, %v871
        %v880 = vld [vmem:[%s4] sm:$0xff]
        %v881 = vld [vmem:[%s4 + $0x8] sm:$0xff]
        %v882 = vld [vmem:[%s4 + $0x10] sm:$0xff]
        %v883 = vld [vmem:[%s4 + $0x18] sm:$0xff]
        %v884 = vld [vmem:[%s4 + $0x20] sm:$0xff]
        %v885 = vld [vmem:[%s4 + $0x28] sm:$0xff]
        %v886 = vld [vmem:[%s4 + $0x30] sm:$0xff]
        %v887 = vld [vmem:[%s4 + $0x38] sm:$0xff]
        %vm888 = vcmask 64512
        %v890 = vsel %vm888, %v880, 0
        %v893 = vsel %vm888, %v881, 0
        %v896 = vsel %vm888, %v882, 0
        %v899 = vsel %vm888, %v883, 0
        %v902 = vsel %vm888, %v884, 0
        %v905 = vsel %vm888, %v885, 0
        %v908 = vsel %vm888, %v886, 0
        %v911 = vsel %vm888, %v887, 0
        %913 = vmatprep.subr.mxu0 0.0
        %914 = vmatpush1.msra.mxu0 0.0
        %915 = vmatprep.subr.mxu0 0.0
        %916 = vmatpush1.msra.mxu0 0.0
        %917 = vmatprep.subr.mxu0 0.0
        %918 = vmatpush1.msra.mxu0 0.0
        %919 = vmatprep.subr.mxu0 0.0
        %920 = vmatpush1.msra.mxu0 0.0
        %921 = vmatprep.subr.mxu0 0.0
        %922 = vmatpush1.msra.mxu0 0.0
        %923 = vmatprep.subr.mxu0 0.0
        %924 = vmatpush1.msra.mxu0 0.0
        %925 = vmatprep.subr.mxu0 0.0
        %926 = vmatpush1.msra.mxu0 0.0
        %927 = vmatprep.subr.mxu0 0.0
        %928 = vmatpush1.msra.mxu0 0.0
        %929 = vmatprep.subr.mxu0 0.0
        %930 = vmatpush1.msra.mxu0 0.0
        %931 = vmatprep.subr.mxu0 0.0
        %932 = vmatpush1.msra.mxu0 0.0
        %933 = vmatprep.subr.mxu0 0.0
        %934 = vmatpush1.msra.mxu0 0.0
        %935 = vmatprep.subr.mxu0 0.0
        %936 = vmatpush1.msra.mxu0 0.0
        %937 = vmatprep.subr.mxu0 0.0
        %938 = vmatpush1.msra.mxu0 0.0
        %939 = vmatprep.subr.mxu0 0.0
        %940 = vmatpush1.msra.mxu0 0.0
        %941 = vmatprep.subr.mxu0 0.0
        %942 = vmatpush1.msra.mxu0 0.0
        %943 = vmatprep.subr.mxu0 0.0
        %944 = vmatpush1.msra.mxu0 %v607
        %945 = vmatprep.subr.mxu0 0.0
        %946 = vmatpush2.msra.mxu0 0.0
        %947 = vmatprep.subr.mxu0 0.0
        %948 = vmatpush2.msra.mxu0 0.0
        %949 = vmatprep.subr.mxu0 0.0
        %950 = vmatpush2.msra.mxu0 0.0
        %951 = vmatprep.subr.mxu0 0.0
        %952 = vmatpush2.msra.mxu0 0.0
        %953 = vmatprep.subr.mxu0 0.0
        %954 = vmatpush2.msra.mxu0 0.0
        %955 = vmatprep.subr.mxu0 0.0
        %956 = vmatpush2.msra.mxu0 0.0
        %957 = vmatprep.subr.mxu0 0.0
        %958 = vmatpush2.msra.mxu0 0.0
        %959 = vmatprep.subr.mxu0 0.0
        %960 = vmatpush2.msra.mxu0 0.0
        %961 = vmatprep.subr.mxu0 0.0
        %962 = vmatpush2.msra.mxu0 0.0
        %963 = vmatprep.subr.mxu0 0.0
        %964 = vmatpush2.msra.mxu0 0.0
        %965 = vmatprep.subr.mxu0 0.0
        %966 = vmatpush2.msra.mxu0 0.0
        %967 = vmatprep.subr.mxu0 0.0
        %968 = vmatpush2.msra.mxu0 0.0
        %969 = vmatprep.subr.mxu0 0.0
        %970 = vmatpush2.msra.mxu0 0.0
        %971 = vmatprep.subr.mxu0 0.0
        %972 = vmatpush2.msra.mxu0 0.0
        %973 = vmatprep.subr.mxu0 0.0
        %974 = vmatpush2.msra.mxu0 0.0
        %975 = vmatprep.subr.mxu0 0.0
        %976 = vmatpush2.msra.mxu0 0.0
        %977 = vmatprep.mubr.f32.mxu0 0.0
        %978 = vmatmul.mubr.f32.gmra.mxu0 %v890
        %v979 = vpop.f32.mrf.mxu0
        %v980 = vadd.f32 0.0, %v979
        %v981 = vpop.f32.mrf.mxu0
        %982 = vmatprep.mubr.f32.mxu0 0.0
        %983 = vmatmul.mubr.f32.gmra.mxu0 %v893
        %v984 = vpop.f32.mrf.mxu0
        %v985 = vadd.f32 0.0, %v984
        %v986 = vpop.f32.mrf.mxu0
        %987 = vmatprep.mubr.f32.mxu0 0.0
        %988 = vmatmul.mubr.f32.gmra.mxu0 %v896
        %v989 = vpop.f32.mrf.mxu0
        %v990 = vadd.f32 0.0, %v989
        %v991 = vpop.f32.mrf.mxu0
        %992 = vmatprep.mubr.f32.mxu0 0.0
        %993 = vmatmul.mubr.f32.gmra.mxu0 %v899
        %v994 = vpop.f32.mrf.mxu0
        %v995 = vadd.f32 0.0, %v994
        %v996 = vpop.f32.mrf.mxu0
        %997 = vmatprep.mubr.f32.mxu0 0.0
        %998 = vmatmul.mubr.f32.gmra.mxu0 %v902
        %v999 = vpop.f32.mrf.mxu0
        %v1000 = vadd.f32 0.0, %v999
        %v1001 = vpop.f32.mrf.mxu0
        %1002 = vmatprep.mubr.f32.mxu0 0.0
        %1003 = vmatmul.mubr.f32.gmra.mxu0 %v905
        %v1004 = vpop.f32.mrf.mxu0
        %v1005 = vadd.f32 0.0, %v1004
        %v1006 = vpop.f32.mrf.mxu0
        %1007 = vmatprep.mubr.f32.mxu0 0.0
        %1008 = vmatmul.mubr.f32.gmra.mxu0 %v908
        %v1009 = vpop.f32.mrf.mxu0
        %v1010 = vadd.f32 0.0, %v1009
        %v1011 = vpop.f32.mrf.mxu0
        %1012 = vmatprep.mubr.f32.mxu0 0.0
        %1013 = vmatmul.mubr.f32.gmra.mxu0 %v911
        %v1014 = vpop.f32.mrf.mxu0
        %v1015 = vadd.f32 0.0, %v1014
        %v1016 = vpop.f32.mrf.mxu0
        %1017 = vdwg.mxu0
        %1018 = vrot.lane.b32.xlu0 %v880, 120
        %v1019 = vpop.permute.xlu0 %1018
        %1020 = vrot.lane.b32.xlu0 %v881, 120
        %v1021 = vpop.permute.xlu0 %1020
        %1022 = vrot.lane.b32.xlu0 %v882, 120
        %v1023 = vpop.permute.xlu0 %1022
        %1024 = vrot.lane.b32.xlu0 %v883, 120
        %v1025 = vpop.permute.xlu0 %1024
        %1026 = vrot.lane.b32.xlu0 %v884, 120
        %v1027 = vpop.permute.xlu0 %1026
        %1028 = vrot.lane.b32.xlu0 %v885, 120
        %v1029 = vpop.permute.xlu0 %1028
        %1030 = vrot.lane.b32.xlu0 %v886, 120
        %v1031 = vpop.permute.xlu0 %1030
        %1032 = vrot.lane.b32.xlu0 %v887, 120
        %v1033 = vpop.permute.xlu0 %1032
        %1035 = vrot.lane.b32.xlu0 %v607, 96
        %v1036 = vpop.permute.xlu0 %1035
        %v1038 = vsel %vm888, %v1019, 0
        %v1040 = vsel %vm888, %v1021, 0
        %v1042 = vsel %vm888, %v1023, 0
        %v1044 = vsel %vm888, %v1025, 0
        %v1046 = vsel %vm888, %v1027, 0
        %v1048 = vsel %vm888, %v1029, 0
        %v1050 = vsel %vm888, %v1031, 0
        %v1052 = vsel %vm888, %v1033, 0
        %1054 = vmatprep.subr.mxu0 0.0
        %1055 = vmatpush1.msra.mxu0 0.0
        %1056 = vmatprep.subr.mxu0 0.0
        %1057 = vmatpush1.msra.mxu0 0.0
        %1058 = vmatprep.subr.mxu0 0.0
        %1059 = vmatpush1.msra.mxu0 0.0
        %1060 = vmatprep.subr.mxu0 0.0
        %1061 = vmatpush1.msra.mxu0 0.0
        %1062 = vmatprep.subr.mxu0 0.0
        %1063 = vmatpush1.msra.mxu0 0.0
        %1064 = vmatprep.subr.mxu0 0.0
        %1065 = vmatpush1.msra.mxu0 0.0
        %1066 = vmatprep.subr.mxu0 0.0
        %1067 = vmatpush1.msra.mxu0 0.0
        %1068 = vmatprep.subr.mxu0 0.0
        %1069 = vmatpush1.msra.mxu0 0.0
        %1070 = vmatprep.subr.mxu0 0.0
        %1071 = vmatpush1.msra.mxu0 0.0
        %1072 = vmatprep.subr.mxu0 0.0
        %1073 = vmatpush1.msra.mxu0 0.0
        %1074 = vmatprep.subr.mxu0 0.0
        %1075 = vmatpush1.msra.mxu0 0.0
        %1076 = vmatprep.subr.mxu0 0.0
        %1077 = vmatpush1.msra.mxu0 0.0
        %1078 = vmatprep.subr.mxu0 0.0
        %1079 = vmatpush1.msra.mxu0 0.0
        %1080 = vmatprep.subr.mxu0 0.0
        %1081 = vmatpush1.msra.mxu0 0.0
        %1082 = vmatprep.subr.mxu0 0.0
        %1083 = vmatpush1.msra.mxu0 0.0
        %1084 = vmatprep.subr.mxu0 0.0
        %1085 = vmatpush1.msra.mxu0 %v1036
        %1086 = vmatprep.subr.mxu0 0.0
        %1087 = vmatpush2.msra.mxu0 0.0
        %1088 = vmatprep.subr.mxu0 0.0
        %1089 = vmatpush2.msra.mxu0 0.0
        %1090 = vmatprep.subr.mxu0 0.0
        %1091 = vmatpush2.msra.mxu0 0.0
        %1092 = vmatprep.subr.mxu0 0.0
        %1093 = vmatpush2.msra.mxu0 0.0
        %1094 = vmatprep.subr.mxu0 0.0
        %1095 = vmatpush2.msra.mxu0 0.0
        %1096 = vmatprep.subr.mxu0 0.0
        %1097 = vmatpush2.msra.mxu0 0.0
        %1098 = vmatprep.subr.mxu0 0.0
        %1099 = vmatpush2.msra.mxu0 0.0
        %1100 = vmatprep.subr.mxu0 0.0
        %1101 = vmatpush2.msra.mxu0 0.0
        %1102 = vmatprep.subr.mxu0 0.0
        %1103 = vmatpush2.msra.mxu0 0.0
        %1104 = vmatprep.subr.mxu0 0.0
        %1105 = vmatpush2.msra.mxu0 0.0
        %1106 = vmatprep.subr.mxu0 0.0
        %1107 = vmatpush2.msra.mxu0 0.0
        %1108 = vmatprep.subr.mxu0 0.0
        %1109 = vmatpush2.msra.mxu0 0.0
        %1110 = vmatprep.subr.mxu0 0.0
        %1111 = vmatpush2.msra.mxu0 0.0
        %1112 = vmatprep.subr.mxu0 0.0
        %1113 = vmatpush2.msra.mxu0 0.0
        %1114 = vmatprep.subr.mxu0 0.0
        %1115 = vmatpush2.msra.mxu0 0.0
        %1116 = vmatprep.subr.mxu0 0.0
        %1117 = vmatpush2.msra.mxu0 0.0
        %1118 = vmatprep.mubr.f32.mxu0 0.0
        %1119 = vmatmul.mubr.f32.gmra.mxu0 %v1038
        %v1120 = vpop.f32.mrf.mxu0
        %v1121 = vadd.f32 0.0, %v1120
        %v1122 = vpop.f32.mrf.mxu0
        %1123 = vmatprep.mubr.f32.mxu0 0.0
        %1124 = vmatmul.mubr.f32.gmra.mxu0 %v1040
        %v1125 = vpop.f32.mrf.mxu0
        %v1126 = vadd.f32 0.0, %v1125
        %v1127 = vpop.f32.mrf.mxu0
        %1128 = vmatprep.mubr.f32.mxu0 0.0
        %1129 = vmatmul.mubr.f32.gmra.mxu0 %v1042
        %v1130 = vpop.f32.mrf.mxu0
        %v1131 = vadd.f32 0.0, %v1130
        %v1132 = vpop.f32.mrf.mxu0
        %1133 = vmatprep.mubr.f32.mxu0 0.0
        %1134 = vmatmul.mubr.f32.gmra.mxu0 %v1044
        %v1135 = vpop.f32.mrf.mxu0
        %v1136 = vadd.f32 0.0, %v1135
        %v1137 = vpop.f32.mrf.mxu0
        %1138 = vmatprep.mubr.f32.mxu0 0.0
        %1139 = vmatmul.mubr.f32.gmra.mxu0 %v1046
        %v1140 = vpop.f32.mrf.mxu0
        %v1141 = vadd.f32 0.0, %v1140
        %v1142 = vpop.f32.mrf.mxu0
        %1143 = vmatprep.mubr.f32.mxu0 0.0
        %1144 = vmatmul.mubr.f32.gmra.mxu0 %v1048
        %v1145 = vpop.f32.mrf.mxu0
        %v1146 = vadd.f32 0.0, %v1145
        %v1147 = vpop.f32.mrf.mxu0
        %1148 = vmatprep.mubr.f32.mxu0 0.0
        %1149 = vmatmul.mubr.f32.gmra.mxu0 %v1050
        %v1150 = vpop.f32.mrf.mxu0
        %v1151 = vadd.f32 0.0, %v1150
        %v1152 = vpop.f32.mrf.mxu0
        %1153 = vmatprep.mubr.f32.mxu0 0.0
        %1154 = vmatmul.mubr.f32.gmra.mxu0 %v1052
        %v1155 = vpop.f32.mrf.mxu0
        %v1156 = vadd.f32 0.0, %v1155
        %v1157 = vpop.f32.mrf.mxu0
        %1158 = vdwg.mxu0
        %v1159 = vmul.f32 %v980, %v1121
        %v1160 = vmul.f32 %v985, %v1126
        %v1161 = vmul.f32 %v990, %v1131
        %v1162 = vmul.f32 %v995, %v1136
        %v1163 = vmul.f32 %v1000, %v1141
        %v1164 = vmul.f32 %v1005, %v1146
        %v1165 = vmul.f32 %v1010, %v1151
        %v1166 = vmul.f32 %v1015, %v1156
        %v1167 = vmul.f32 %v1159, %v872
        %v1168 = vmul.f32 %v1160, %v873
        %v1169 = vmul.f32 %v1161, %v874
        %v1170 = vmul.f32 %v1162, %v875
        %v1171 = vmul.f32 %v1163, %v876
        %v1172 = vmul.f32 %v1164, %v877
        %v1173 = vmul.f32 %v1165, %v878
        %v1174 = vmul.f32 %v1166, %v879
        %v1175 = vld [vmem:[%s5] sm:$0xff]
        %v1176 = vld [vmem:[%s5 + $0x8] sm:$0xff]
        %v1177 = vld [vmem:[%s5 + $0x10] sm:$0xff]
        %v1178 = vld [vmem:[%s5 + $0x18] sm:$0xff]
        %v1180 = vsel %vm514, %v1167, 0
        %v1183 = vsel %vm514, %v1168, 0
        %v1186 = vsel %vm514, %v1169, 0
        %v1189 = vsel %vm514, %v1170, 0
        %v1192 = vsel %vm514, %v1171, 0
        %v1195 = vsel %vm514, %v1172, 0
        %v1198 = vsel %vm514, %v1173, 0
        %v1201 = vsel %vm514, %v1174, 0
        %1203 = vmatprep.subr.mxu0 0.0
        %1204 = vmatpush1.msra.mxu0 0.0
        %1205 = vmatprep.subr.mxu0 0.0
        %1206 = vmatpush1.msra.mxu0 0.0
        %1207 = vmatprep.subr.mxu0 0.0
        %1208 = vmatpush1.msra.mxu0 0.0
        %1209 = vmatprep.subr.mxu0 0.0
        %1210 = vmatpush1.msra.mxu0 0.0
        %1211 = vmatprep.subr.mxu0 0.0
        %1212 = vmatpush1.msra.mxu0 0.0
        %1213 = vmatprep.subr.mxu0 0.0
        %1214 = vmatpush1.msra.mxu0 0.0
        %1215 = vmatprep.subr.mxu0 0.0
        %1216 = vmatpush1.msra.mxu0 0.0
        %1217 = vmatprep.subr.mxu0 0.0
        %1218 = vmatpush1.msra.mxu0 0.0
        %1219 = vmatprep.subr.mxu0 0.0
        %1220 = vmatpush1.msra.mxu0 0.0
        %1221 = vmatprep.subr.mxu0 0.0
        %1222 = vmatpush1.msra.mxu0 0.0
        %1223 = vmatprep.subr.mxu0 0.0
        %1224 = vmatpush1.msra.mxu0 0.0
        %1225 = vmatprep.subr.mxu0 0.0
        %1226 = vmatpush1.msra.mxu0 0.0
        %1227 = vmatprep.subr.mxu0 0.0
        %1228 = vmatpush1.msra.mxu0 %v1178
        %1229 = vmatprep.subr.mxu0 0.0
        %1230 = vmatpush1.msra.mxu0 %v1177
        %1231 = vmatprep.subr.mxu0 0.0
        %1232 = vmatpush1.msra.mxu0 %v1176
        %1233 = vmatprep.subr.mxu0 0.0
        %1234 = vmatpush1.msra.mxu0 %v1175
        %1235 = vmatprep.subr.mxu0 0.0
        %1236 = vmatpush2.msra.mxu0 0.0
        %1237 = vmatprep.subr.mxu0 0.0
        %1238 = vmatpush2.msra.mxu0 0.0
        %1239 = vmatprep.subr.mxu0 0.0
        %1240 = vmatpush2.msra.mxu0 0.0
        %1241 = vmatprep.subr.mxu0 0.0
        %1242 = vmatpush2.msra.mxu0 0.0
        %1243 = vmatprep.subr.mxu0 0.0
        %1244 = vmatpush2.msra.mxu0 0.0
        %1245 = vmatprep.subr.mxu0 0.0
        %1246 = vmatpush2.msra.mxu0 0.0
        %1247 = vmatprep.subr.mxu0 0.0
        %1248 = vmatpush2.msra.mxu0 0.0
        %1249 = vmatprep.subr.mxu0 0.0
        %1250 = vmatpush2.msra.mxu0 0.0
        %1251 = vmatprep.subr.mxu0 0.0
        %1252 = vmatpush2.msra.mxu0 0.0
        %1253 = vmatprep.subr.mxu0 0.0
        %1254 = vmatpush2.msra.mxu0 0.0
        %1255 = vmatprep.subr.mxu0 0.0
        %1256 = vmatpush2.msra.mxu0 0.0
        %1257 = vmatprep.subr.mxu0 0.0
        %1258 = vmatpush2.msra.mxu0 0.0
        %1259 = vmatprep.subr.mxu0 0.0
        %1260 = vmatpush2.msra.mxu0 0.0
        %1261 = vmatprep.subr.mxu0 0.0
        %1262 = vmatpush2.msra.mxu0 0.0
        %1263 = vmatprep.subr.mxu0 0.0
        %1264 = vmatpush2.msra.mxu0 0.0
        %1265 = vmatprep.subr.mxu0 0.0
        %1266 = vmatpush2.msra.mxu0 0.0
        %1267 = vmatprep.mubr.f32.mxu0 0.0
        %1268 = vmatmul.mubr.f32.gmra.mxu0 %v1180
        %v1269 = vpop.f32.mrf.mxu0
        %v1270 = vadd.f32 0.0, %v1269
        %v1271 = vpop.f32.mrf.mxu0
        %1272 = vmatprep.mubr.f32.mxu0 0.0
        %1273 = vmatmul.mubr.f32.gmra.mxu0 %v1183
        %v1274 = vpop.f32.mrf.mxu0
        %v1275 = vadd.f32 0.0, %v1274
        %v1276 = vpop.f32.mrf.mxu0
        %1277 = vmatprep.mubr.f32.mxu0 0.0
        %1278 = vmatmul.mubr.f32.gmra.mxu0 %v1186
        %v1279 = vpop.f32.mrf.mxu0
        %v1280 = vadd.f32 0.0, %v1279
        %v1281 = vpop.f32.mrf.mxu0
        %1282 = vmatprep.mubr.f32.mxu0 0.0
        %1283 = vmatmul.mubr.f32.gmra.mxu0 %v1189
        %v1284 = vpop.f32.mrf.mxu0
        %v1285 = vadd.f32 0.0, %v1284
        %v1286 = vpop.f32.mrf.mxu0
        %1287 = vmatprep.mubr.f32.mxu0 0.0
        %1288 = vmatmul.mubr.f32.gmra.mxu0 %v1192
        %v1289 = vpop.f32.mrf.mxu0
        %v1290 = vadd.f32 0.0, %v1289
        %v1291 = vpop.f32.mrf.mxu0
        %1292 = vmatprep.mubr.f32.mxu0 0.0
        %1293 = vmatmul.mubr.f32.gmra.mxu0 %v1195
        %v1294 = vpop.f32.mrf.mxu0
        %v1295 = vadd.f32 0.0, %v1294
        %v1296 = vpop.f32.mrf.mxu0
        %1297 = vmatprep.mubr.f32.mxu0 0.0
        %1298 = vmatmul.mubr.f32.gmra.mxu0 %v1198
        %v1299 = vpop.f32.mrf.mxu0
        %v1300 = vadd.f32 0.0, %v1299
        %v1301 = vpop.f32.mrf.mxu0
        %1302 = vmatprep.mubr.f32.mxu0 0.0
        %1303 = vmatmul.mubr.f32.gmra.mxu0 %v1201
        %v1304 = vpop.f32.mrf.mxu0
        %v1305 = vadd.f32 0.0, %v1304
        %v1306 = vpop.f32.mrf.mxu0
        %1307 = vdwg.mxu0
        %v1308 = vxor.u32 %v1270, 2147483648
        %v1309 = vxor.u32 %v1275, 2147483648
        %v1310 = vxor.u32 %v1280, 2147483648
        %v1311 = vxor.u32 %v1285, 2147483648
        %v1312 = vxor.u32 %v1290, 2147483648
        %v1313 = vxor.u32 %v1295, 2147483648
        %v1314 = vxor.u32 %v1300, 2147483648
        %v1315 = vxor.u32 %v1305, 2147483648
        %v1316 = vmul.f32 %v1308, 1.442695
        %v1317 = vpow.pop %v1316
        %v1318 = vmul.f32 %v1309, 1.442695
        %v1319 = vpow.pop %v1318
        %v1320 = vmul.f32 %v1310, 1.442695
        %v1321 = vpow.pop %v1320
        %v1322 = vmul.f32 %v1311, 1.442695
        %v1323 = vpow.pop %v1322
        %v1324 = vmul.f32 %v1312, 1.442695
        %v1325 = vpow.pop %v1324
        %v1326 = vmul.f32 %v1313, 1.442695
        %v1327 = vpow.pop %v1326
        %v1328 = vmul.f32 %v1314, 1.442695
        %v1329 = vpow.pop %v1328
        %v1330 = vmul.f32 %v1315, 1.442695
        %v1331 = vpow.pop %v1330
        %v1332 = vadd.f32 %v1317, 1.0
        %v1333 = vadd.f32 %v1319, 1.0
        %v1334 = vadd.f32 %v1321, 1.0
        %v1335 = vadd.f32 %v1323, 1.0
        %v1336 = vadd.f32 %v1325, 1.0
        %v1337 = vadd.f32 %v1327, 1.0
        %v1338 = vadd.f32 %v1329, 1.0
        %v1339 = vadd.f32 %v1331, 1.0
        %v1340 = vrcp.pop %v1332
        %v1341 = vmul.f32 1.0, %v1340
        %v1342 = vrcp.pop %v1333
        %v1343 = vmul.f32 1.0, %v1342
        %v1344 = vrcp.pop %v1334
        %v1345 = vmul.f32 1.0, %v1344
        %v1346 = vrcp.pop %v1335
        %v1347 = vmul.f32 1.0, %v1346
        %v1348 = vrcp.pop %v1336
        %v1349 = vmul.f32 1.0, %v1348
        %v1350 = vrcp.pop %v1337
        %v1351 = vmul.f32 1.0, %v1350
        %v1352 = vrcp.pop %v1338
        %v1353 = vmul.f32 1.0, %v1352
        %v1354 = vrcp.pop %v1339
        %v1355 = vmul.f32 1.0, %v1354
        %v1356 = vmul.f32 %v1270, %v1341
        %v1357 = vmul.f32 %v1275, %v1343
        %v1358 = vmul.f32 %v1280, %v1345
        %v1359 = vmul.f32 %v1285, %v1347
        %v1360 = vmul.f32 %v1290, %v1349
        %v1361 = vmul.f32 %v1295, %v1351
        %v1362 = vmul.f32 %v1300, %v1353
        %v1363 = vmul.f32 %v1305, %v1355
        %1365 = vset.pattern.permute.xlu0 0
        %1366 = vperm.xlu0 %1365, %v474
        %v1367 = vpop.permute.xlu0 %1366
        %1370 = vset.pattern.permute.xlu0 0
        %1371 = vperm.xlu0 %1370, %v475
        %v1372 = vpop.permute.xlu0 %1371
        %1375 = vset.pattern.permute.xlu0 0
        %1376 = vperm.xlu0 %1375, %v476
        %v1377 = vpop.permute.xlu0 %1376
        %1380 = vset.pattern.permute.xlu0 0
        %1381 = vperm.xlu0 %1380, %v477
        %v1382 = vpop.permute.xlu0 %1381
        %1385 = vset.pattern.permute.xlu0 0
        %1386 = vperm.xlu0 %1385, %v478
        %v1387 = vpop.permute.xlu0 %1386
        %1390 = vset.pattern.permute.xlu0 0
        %1391 = vperm.xlu0 %1390, %v479
        %v1392 = vpop.permute.xlu0 %1391
        %1395 = vset.pattern.permute.xlu0 0
        %1396 = vperm.xlu0 %1395, %v480
        %v1397 = vpop.permute.xlu0 %1396
        %1400 = vset.pattern.permute.xlu0 0
        %1401 = vperm.xlu0 %1400, %v481
        %v1402 = vpop.permute.xlu0 %1401
        %v1404 = vmul.f32 %v1356, %v1367
        %v1405 = vmul.f32 %v1357, %v1372
        %v1406 = vmul.f32 %v1358, %v1377
        %v1407 = vmul.f32 %v1359, %v1382
        %v1408 = vmul.f32 %v1360, %v1387
        %v1409 = vmul.f32 %v1361, %v1392
        %v1410 = vmul.f32 %v1362, %v1397
        %v1411 = vmul.f32 %v1363, %v1402
        %v1412 = vld [vmem:[%s6] sm:$0xf]
        %vm1413 = vcmask 31744
        %v1415 = vsel %vm1413, %v1404, 0
        %v1418 = vsel %vm1413, %v1405, 0
        %v1421 = vsel %vm1413, %v1406, 0
        %v1424 = vsel %vm1413, %v1407, 0
        %v1427 = vsel %vm1413, %v1408, 0
        %v1430 = vsel %vm1413, %v1409, 0
        %v1433 = vsel %vm1413, %v1410, 0
        %v1436 = vsel %vm1413, %v1411, 0
        %vm1438 = vcmask 1043456
        %v1440 = vsel %vm1438, %v1412, 0
        %1442 = vmatprep.subr.mxu0 0.0
        %1443 = vmatpush1.msra.mxu0 0.0
        %1444 = vmatprep.subr.mxu0 0.0
        %1445 = vmatpush1.msra.mxu0 0.0
        %1446 = vmatprep.subr.mxu0 0.0
        %1447 = vmatpush1.msra.mxu0 0.0
        %1448 = vmatprep.subr.mxu0 0.0
        %1449 = vmatpush1.msra.mxu0 0.0
        %1450 = vmatprep.subr.mxu0 0.0
        %1451 = vmatpush1.msra.mxu0 0.0
        %1452 = vmatprep.subr.mxu0 0.0
        %1453 = vmatpush1.msra.mxu0 0.0
        %1454 = vmatprep.subr.mxu0 0.0
        %1455 = vmatpush1.msra.mxu0 0.0
        %1456 = vmatprep.subr.mxu0 0.0
        %1457 = vmatpush1.msra.mxu0 0.0
        %1458 = vmatprep.subr.mxu0 0.0
        %1459 = vmatpush1.msra.mxu0 0.0
        %1460 = vmatprep.subr.mxu0 0.0
        %1461 = vmatpush1.msra.mxu0 0.0
        %1462 = vmatprep.subr.mxu0 0.0
        %1463 = vmatpush1.msra.mxu0 0.0
        %1464 = vmatprep.subr.mxu0 0.0
        %1465 = vmatpush1.msra.mxu0 0.0
        %1466 = vmatprep.subr.mxu0 0.0
        %1467 = vmatpush1.msra.mxu0 0.0
        %1468 = vmatprep.subr.mxu0 0.0
        %1469 = vmatpush1.msra.mxu0 0.0
        %1470 = vmatprep.subr.mxu0 0.0
        %1471 = vmatpush1.msra.mxu0 0.0
        %1472 = vmatprep.subr.mxu0 0.0
        %1473 = vmatpush1.msra.mxu0 %v1440
        %1474 = vmatprep.subr.mxu0 0.0
        %1475 = vmatpush2.msra.mxu0 0.0
        %1476 = vmatprep.subr.mxu0 0.0
        %1477 = vmatpush2.msra.mxu0 0.0
        %1478 = vmatprep.subr.mxu0 0.0
        %1479 = vmatpush2.msra.mxu0 0.0
        %1480 = vmatprep.subr.mxu0 0.0
        %1481 = vmatpush2.msra.mxu0 0.0
        %1482 = vmatprep.subr.mxu0 0.0
        %1483 = vmatpush2.msra.mxu0 0.0
        %1484 = vmatprep.subr.mxu0 0.0
        %1485 = vmatpush2.msra.mxu0 0.0
        %1486 = vmatprep.subr.mxu0 0.0
        %1487 = vmatpush2.msra.mxu0 0.0
        %1488 = vmatprep.subr.mxu0 0.0
        %1489 = vmatpush2.msra.mxu0 0.0
        %1490 = vmatprep.subr.mxu0 0.0
        %1491 = vmatpush2.msra.mxu0 0.0
        %1492 = vmatprep.subr.mxu0 0.0
        %1493 = vmatpush2.msra.mxu0 0.0
        %1494 = vmatprep.subr.mxu0 0.0
        %1495 = vmatpush2.msra.mxu0 0.0
        %1496 = vmatprep.subr.mxu0 0.0
        %1497 = vmatpush2.msra.mxu0 0.0
        %1498 = vmatprep.subr.mxu0 0.0
        %1499 = vmatpush2.msra.mxu0 0.0
        %1500 = vmatprep.subr.mxu0 0.0
        %1501 = vmatpush2.msra.mxu0 0.0
        %1502 = vmatprep.subr.mxu0 0.0
        %1503 = vmatpush2.msra.mxu0 0.0
        %1504 = vmatprep.subr.mxu0 0.0
        %1505 = vmatpush2.msra.mxu0 0.0
        %1506 = vmatprep.mubr.f32.mxu0 0.0
        %1507 = vmatmul.mubr.f32.gmra.mxu0 %v1415
        %v1508 = vpop.f32.mrf.mxu0
        %v1509 = vadd.f32 0.0, %v1508
        %v1510 = vpop.f32.mrf.mxu0
        %1511 = vmatprep.mubr.f32.mxu0 0.0
        %1512 = vmatmul.mubr.f32.gmra.mxu0 %v1418
        %v1513 = vpop.f32.mrf.mxu0
        %v1514 = vadd.f32 0.0, %v1513
        %v1515 = vpop.f32.mrf.mxu0
        %1516 = vmatprep.mubr.f32.mxu0 0.0
        %1517 = vmatmul.mubr.f32.gmra.mxu0 %v1421
        %v1518 = vpop.f32.mrf.mxu0
        %v1519 = vadd.f32 0.0, %v1518
        %v1520 = vpop.f32.mrf.mxu0
        %1521 = vmatprep.mubr.f32.mxu0 0.0
        %1522 = vmatmul.mubr.f32.gmra.mxu0 %v1424
        %v1523 = vpop.f32.mrf.mxu0
        %v1524 = vadd.f32 0.0, %v1523
        %v1525 = vpop.f32.mrf.mxu0
        %1526 = vmatprep.mubr.f32.mxu0 0.0
        %1527 = vmatmul.mubr.f32.gmra.mxu0 %v1427
        %v1528 = vpop.f32.mrf.mxu0
        %v1529 = vadd.f32 0.0, %v1528
        %v1530 = vpop.f32.mrf.mxu0
        %1531 = vmatprep.mubr.f32.mxu0 0.0
        %1532 = vmatmul.mubr.f32.gmra.mxu0 %v1430
        %v1533 = vpop.f32.mrf.mxu0
        %v1534 = vadd.f32 0.0, %v1533
        %v1535 = vpop.f32.mrf.mxu0
        %1536 = vmatprep.mubr.f32.mxu0 0.0
        %1537 = vmatmul.mubr.f32.gmra.mxu0 %v1433
        %v1538 = vpop.f32.mrf.mxu0
        %v1539 = vadd.f32 0.0, %v1538
        %v1540 = vpop.f32.mrf.mxu0
        %1541 = vmatprep.mubr.f32.mxu0 0.0
        %1542 = vmatmul.mubr.f32.gmra.mxu0 %v1436
        %v1543 = vpop.f32.mrf.mxu0
        %v1544 = vadd.f32 0.0, %v1543
        %v1545 = vpop.f32.mrf.mxu0
        %1546 = vdwg.mxu0
        %1555 = vrot.lane.b32.xlu0 %v1121, 96
        %v1556 = vpop.permute.xlu0 %1555
        %1557 = vrot.lane.b32.xlu0 %v1126, 96
        %v1558 = vpop.permute.xlu0 %1557
        %1559 = vrot.lane.b32.xlu0 %v1131, 96
        %v1560 = vpop.permute.xlu0 %1559
        %1561 = vrot.lane.b32.xlu0 %v1136, 96
        %v1562 = vpop.permute.xlu0 %1561
        %1563 = vrot.lane.b32.xlu0 %v1141, 96
        %v1564 = vpop.permute.xlu0 %1563
        %1565 = vrot.lane.b32.xlu0 %v1146, 96
        %v1566 = vpop.permute.xlu0 %1565
        %1567 = vrot.lane.b32.xlu0 %v1151, 96
        %v1568 = vpop.permute.xlu0 %1567
        %1569 = vrot.lane.b32.xlu0 %v1156, 96
        %v1570 = vpop.permute.xlu0 %1569
        %v1579 = vmul.f32 %v1509, %v1556
        %v1580 = vmul.f32 %v1514, %v1558
        %v1581 = vmul.f32 %v1519, %v1560
        %v1582 = vmul.f32 %v1524, %v1562
        %v1583 = vmul.f32 %v1529, %v1564
        %v1584 = vmul.f32 %v1534, %v1566
        %v1585 = vmul.f32 %v1539, %v1568
        %v1586 = vmul.f32 %v1544, %v1570
        %1595 = vrot.lane.b32.xlu0 %v872, 96
        %v1596 = vpop.permute.xlu0 %1595
        %1597 = vrot.lane.b32.xlu0 %v873, 96
        %v1598 = vpop.permute.xlu0 %1597
        %1599 = vrot.lane.b32.xlu0 %v874, 96
        %v1600 = vpop.permute.xlu0 %1599
        %1601 = vrot.lane.b32.xlu0 %v875, 96
        %v1602 = vpop.permute.xlu0 %1601
        %1603 = vrot.lane.b32.xlu0 %v876, 96
        %v1604 = vpop.permute.xlu0 %1603
        %1605 = vrot.lane.b32.xlu0 %v877, 96
        %v1606 = vpop.permute.xlu0 %1605
        %1607 = vrot.lane.b32.xlu0 %v878, 96
        %v1608 = vpop.permute.xlu0 %1607
        %1609 = vrot.lane.b32.xlu0 %v879, 96
        %v1610 = vpop.permute.xlu0 %1609
        %v1619 = vmul.f32 %v1579, %v1596
        %v1620 = vmul.f32 %v1580, %v1598
        %v1621 = vmul.f32 %v1581, %v1600
        %v1622 = vmul.f32 %v1582, %v1602
        %v1623 = vmul.f32 %v1583, %v1604
        %v1624 = vmul.f32 %v1584, %v1606
        %v1625 = vmul.f32 %v1585, %v1608
        %v1626 = vmul.f32 %v1586, %v1610
        %v1627 = vsel %vm514, %v1619, 0.0
        %v1628 = vrot.slane %v1627, 4
        %v1629 = vadd.f32 %v1627, %v1628
        %v1630 = vrot.slane %v1629, 2
        %v1631 = vadd.f32 %v1629, %v1630
        %v1632 = vrot.slane %v1631, 1
        %v1633 = vadd.f32 %v1631, %v1632
        %v1634 = vsel %vm514, %v1620, 0.0
        %v1635 = vrot.slane %v1634, 4
        %v1636 = vadd.f32 %v1634, %v1635
        %v1637 = vrot.slane %v1636, 2
        %v1638 = vadd.f32 %v1636, %v1637
        %v1639 = vrot.slane %v1638, 1
        %v1640 = vadd.f32 %v1638, %v1639
        %v1641 = vsel %vm514, %v1621, 0.0
        %v1642 = vrot.slane %v1641, 4
        %v1643 = vadd.f32 %v1641, %v1642
        %v1644 = vrot.slane %v1643, 2
        %v1645 = vadd.f32 %v1643, %v1644
        %v1646 = vrot.slane %v1645, 1
        %v1647 = vadd.f32 %v1645, %v1646
        %v1648 = vsel %vm514, %v1622, 0.0
        %v1649 = vrot.slane %v1648, 4
        %v1650 = vadd.f32 %v1648, %v1649
        %v1651 = vrot.slane %v1650, 2
        %v1652 = vadd.f32 %v1650, %v1651
        %v1653 = vrot.slane %v1652, 1
        %v1654 = vadd.f32 %v1652, %v1653
        %v1655 = vsel %vm514, %v1623, 0.0
        %v1656 = vrot.slane %v1655, 4
        %v1657 = vadd.f32 %v1655, %v1656
        %v1658 = vrot.slane %v1657, 2
        %v1659 = vadd.f32 %v1657, %v1658
        %v1660 = vrot.slane %v1659, 1
        %v1661 = vadd.f32 %v1659, %v1660
        %v1662 = vsel %vm514, %v1624, 0.0
        %v1663 = vrot.slane %v1662, 4
        %v1664 = vadd.f32 %v1662, %v1663
        %v1665 = vrot.slane %v1664, 2
        %v1666 = vadd.f32 %v1664, %v1665
        %v1667 = vrot.slane %v1666, 1
        %v1668 = vadd.f32 %v1666, %v1667
        %v1669 = vsel %vm514, %v1625, 0.0
        %v1670 = vrot.slane %v1669, 4
        %v1671 = vadd.f32 %v1669, %v1670
        %v1672 = vrot.slane %v1671, 2
        %v1673 = vadd.f32 %v1671, %v1672
        %v1674 = vrot.slane %v1673, 1
        %v1675 = vadd.f32 %v1673, %v1674
        %v1676 = vsel %vm514, %v1626, 0.0
        %v1677 = vrot.slane %v1676, 4
        %v1678 = vadd.f32 %v1676, %v1677
        %v1679 = vrot.slane %v1678, 2
        %v1680 = vadd.f32 %v1678, %v1679
        %v1681 = vrot.slane %v1680, 1
        %v1682 = vadd.f32 %v1680, %v1681
        %v1683 = vmul.f32 %v1121, %v872
        %v1684 = vmul.f32 %v1126, %v873
        %v1685 = vmul.f32 %v1131, %v874
        %v1686 = vmul.f32 %v1136, %v875
        %v1687 = vmul.f32 %v1141, %v876
        %v1688 = vmul.f32 %v1146, %v877
        %v1689 = vmul.f32 %v1151, %v878
        %v1690 = vmul.f32 %v1156, %v879
        %1691 = vset.pattern.permute.xlu0 1
        %1692 = vperm.xlu0 %1691, %v474
        %v1693 = vpop.permute.xlu0 %1692
        %1695 = vset.pattern.permute.xlu0 1
        %1696 = vperm.xlu0 %1695, %v475
        %v1697 = vpop.permute.xlu0 %1696
        %1699 = vset.pattern.permute.xlu0 1
        %1700 = vperm.xlu0 %1699, %v476
        %v1701 = vpop.permute.xlu0 %1700
        %1703 = vset.pattern.permute.xlu0 1
        %1704 = vperm.xlu0 %1703, %v477
        %v1705 = vpop.permute.xlu0 %1704
        %1707 = vset.pattern.permute.xlu0 1
        %1708 = vperm.xlu0 %1707, %v478
        %v1709 = vpop.permute.xlu0 %1708
        %1711 = vset.pattern.permute.xlu0 1
        %1712 = vperm.xlu0 %1711, %v479
        %v1713 = vpop.permute.xlu0 %1712
        %1715 = vset.pattern.permute.xlu0 1
        %1716 = vperm.xlu0 %1715, %v480
        %v1717 = vpop.permute.xlu0 %1716
        %1719 = vset.pattern.permute.xlu0 1
        %1720 = vperm.xlu0 %1719, %v481
        %v1721 = vpop.permute.xlu0 %1720
        %v1723 = vmul.f32 %v1683, %v1693
        %v1724 = vmul.f32 %v1684, %v1697
        %v1725 = vmul.f32 %v1685, %v1701
        %v1726 = vmul.f32 %v1686, %v1705
        %v1727 = vmul.f32 %v1687, %v1709
        %v1728 = vmul.f32 %v1688, %v1713
        %v1729 = vmul.f32 %v1689, %v1717
        %v1730 = vmul.f32 %v1690, %v1721
        %1739 = vrot.lane.b32.xlu0 %v1723, 64
        %v1740 = vpop.permute.xlu0 %1739
        %1741 = vrot.lane.b32.xlu0 %v1724, 64
        %v1742 = vpop.permute.xlu0 %1741
        %1743 = vrot.lane.b32.xlu0 %v1725, 64
        %v1744 = vpop.permute.xlu0 %1743
        %1745 = vrot.lane.b32.xlu0 %v1726, 64
        %v1746 = vpop.permute.xlu0 %1745
        %1747 = vrot.lane.b32.xlu0 %v1727, 64
        %v1748 = vpop.permute.xlu0 %1747
        %1749 = vrot.lane.b32.xlu0 %v1728, 64
        %v1750 = vpop.permute.xlu0 %1749
        %1751 = vrot.lane.b32.xlu0 %v1729, 64
        %v1752 = vpop.permute.xlu0 %1751
        %1753 = vrot.lane.b32.xlu0 %v1730, 64
        %v1754 = vpop.permute.xlu0 %1753
        %v1763 = vmul.f32 %v471, %v1740
        %v1764 = vmul.f32 %v471, %v1742
        %v1765 = vmul.f32 %v471, %v1744
        %v1766 = vmul.f32 %v471, %v1746
        %v1767 = vmul.f32 %v471, %v1748
        %v1768 = vmul.f32 %v471, %v1750
        %v1769 = vmul.f32 %v471, %v1752
        %v1770 = vmul.f32 %v471, %v1754
        %v1771 = vmul.f32 %v472, %v1740
        %v1772 = vmul.f32 %v472, %v1742
        %v1773 = vmul.f32 %v472, %v1744
        %v1774 = vmul.f32 %v472, %v1746
        %v1775 = vmul.f32 %v472, %v1748
        %v1776 = vmul.f32 %v472, %v1750
        %v1777 = vmul.f32 %v472, %v1752
        %v1778 = vmul.f32 %v472, %v1754
        %v1779 = vmul.f32 %v473, %v1740
        %v1780 = vmul.f32 %v473, %v1742
        %v1781 = vmul.f32 %v473, %v1744
        %v1782 = vmul.f32 %v473, %v1746
        %v1783 = vmul.f32 %v473, %v1748
        %v1784 = vmul.f32 %v473, %v1750
        %v1785 = vmul.f32 %v473, %v1752
        %v1786 = vmul.f32 %v473, %v1754
        %v1787 = vsel %vm514, %v1763, 0.0
        %v1788 = vrot.slane %v1787, 4
        %v1789 = vadd.f32 %v1787, %v1788
        %v1790 = vrot.slane %v1789, 2
        %v1791 = vadd.f32 %v1789, %v1790
        %v1792 = vrot.slane %v1791, 1
        %v1793 = vadd.f32 %v1791, %v1792
        %v1794 = vsel %vm514, %v1764, 0.0
        %v1795 = vrot.slane %v1794, 4
        %v1796 = vadd.f32 %v1794, %v1795
        %v1797 = vrot.slane %v1796, 2
        %v1798 = vadd.f32 %v1796, %v1797
        %v1799 = vrot.slane %v1798, 1
        %v1800 = vadd.f32 %v1798, %v1799
        %v1801 = vsel %vm514, %v1765, 0.0
        %v1802 = vrot.slane %v1801, 4
        %v1803 = vadd.f32 %v1801, %v1802
        %v1804 = vrot.slane %v1803, 2
        %v1805 = vadd.f32 %v1803, %v1804
        %v1806 = vrot.slane %v1805, 1
        %v1807 = vadd.f32 %v1805, %v1806
        %v1808 = vsel %vm514, %v1766, 0.0
        %v1809 = vrot.slane %v1808, 4
        %v1810 = vadd.f32 %v1808, %v1809
        %v1811 = vrot.slane %v1810, 2
        %v1812 = vadd.f32 %v1810, %v1811
        %v1813 = vrot.slane %v1812, 1
        %v1814 = vadd.f32 %v1812, %v1813
        %v1815 = vsel %vm514, %v1767, 0.0
        %v1816 = vrot.slane %v1815, 4
        %v1817 = vadd.f32 %v1815, %v1816
        %v1818 = vrot.slane %v1817, 2
        %v1819 = vadd.f32 %v1817, %v1818
        %v1820 = vrot.slane %v1819, 1
        %v1821 = vadd.f32 %v1819, %v1820
        %v1822 = vsel %vm514, %v1768, 0.0
        %v1823 = vrot.slane %v1822, 4
        %v1824 = vadd.f32 %v1822, %v1823
        %v1825 = vrot.slane %v1824, 2
        %v1826 = vadd.f32 %v1824, %v1825
        %v1827 = vrot.slane %v1826, 1
        %v1828 = vadd.f32 %v1826, %v1827
        %v1829 = vsel %vm514, %v1769, 0.0
        %v1830 = vrot.slane %v1829, 4
        %v1831 = vadd.f32 %v1829, %v1830
        %v1832 = vrot.slane %v1831, 2
        %v1833 = vadd.f32 %v1831, %v1832
        %v1834 = vrot.slane %v1833, 1
        %v1835 = vadd.f32 %v1833, %v1834
        %v1836 = vsel %vm514, %v1770, 0.0
        %v1837 = vrot.slane %v1836, 4
        %v1838 = vadd.f32 %v1836, %v1837
        %v1839 = vrot.slane %v1838, 2
        %v1840 = vadd.f32 %v1838, %v1839
        %v1841 = vrot.slane %v1840, 1
        %v1842 = vadd.f32 %v1840, %v1841
        %v1843 = vsel %vm514, %v1771, 0.0
        %v1844 = vrot.slane %v1843, 4
        %v1845 = vadd.f32 %v1843, %v1844
        %v1846 = vrot.slane %v1845, 2
        %v1847 = vadd.f32 %v1845, %v1846
        %v1848 = vrot.slane %v1847, 1
        %v1849 = vadd.f32 %v1847, %v1848
        %v1850 = vsel %vm514, %v1772, 0.0
        %v1851 = vrot.slane %v1850, 4
        %v1852 = vadd.f32 %v1850, %v1851
        %v1853 = vrot.slane %v1852, 2
        %v1854 = vadd.f32 %v1852, %v1853
        %v1855 = vrot.slane %v1854, 1
        %v1856 = vadd.f32 %v1854, %v1855
        %v1857 = vsel %vm514, %v1773, 0.0
        %v1858 = vrot.slane %v1857, 4
        %v1859 = vadd.f32 %v1857, %v1858
        %v1860 = vrot.slane %v1859, 2
        %v1861 = vadd.f32 %v1859, %v1860
        %v1862 = vrot.slane %v1861, 1
        %v1863 = vadd.f32 %v1861, %v1862
        %v1864 = vsel %vm514, %v1774, 0.0
        %v1865 = vrot.slane %v1864, 4
        %v1866 = vadd.f32 %v1864, %v1865
        %v1867 = vrot.slane %v1866, 2
        %v1868 = vadd.f32 %v1866, %v1867
        %v1869 = vrot.slane %v1868, 1
        %v1870 = vadd.f32 %v1868, %v1869
        %v1871 = vsel %vm514, %v1775, 0.0
        %v1872 = vrot.slane %v1871, 4
        %v1873 = vadd.f32 %v1871, %v1872
        %v1874 = vrot.slane %v1873, 2
        %v1875 = vadd.f32 %v1873, %v1874
        %v1876 = vrot.slane %v1875, 1
        %v1877 = vadd.f32 %v1875, %v1876
        %v1878 = vsel %vm514, %v1776, 0.0
        %v1879 = vrot.slane %v1878, 4
        %v1880 = vadd.f32 %v1878, %v1879
        %v1881 = vrot.slane %v1880, 2
        %v1882 = vadd.f32 %v1880, %v1881
        %v1883 = vrot.slane %v1882, 1
        %v1884 = vadd.f32 %v1882, %v1883
        %v1885 = vsel %vm514, %v1777, 0.0
        %v1886 = vrot.slane %v1885, 4
        %v1887 = vadd.f32 %v1885, %v1886
        %v1888 = vrot.slane %v1887, 2
        %v1889 = vadd.f32 %v1887, %v1888
        %v1890 = vrot.slane %v1889, 1
        %v1891 = vadd.f32 %v1889, %v1890
        %v1892 = vsel %vm514, %v1778, 0.0
        %v1893 = vrot.slane %v1892, 4
        %v1894 = vadd.f32 %v1892, %v1893
        %v1895 = vrot.slane %v1894, 2
        %v1896 = vadd.f32 %v1894, %v1895
        %v1897 = vrot.slane %v1896, 1
        %v1898 = vadd.f32 %v1896, %v1897
        %v1899 = vsel %vm514, %v1779, 0.0
        %v1900 = vrot.slane %v1899, 4
        %v1901 = vadd.f32 %v1899, %v1900
        %v1902 = vrot.slane %v1901, 2
        %v1903 = vadd.f32 %v1901, %v1902
        %v1904 = vrot.slane %v1903, 1
        %v1905 = vadd.f32 %v1903, %v1904
        %v1906 = vsel %vm514, %v1780, 0.0
        %v1907 = vrot.slane %v1906, 4
        %v1908 = vadd.f32 %v1906, %v1907
        %v1909 = vrot.slane %v1908, 2
        %v1910 = vadd.f32 %v1908, %v1909
        %v1911 = vrot.slane %v1910, 1
        %v1912 = vadd.f32 %v1910, %v1911
        %v1913 = vsel %vm514, %v1781, 0.0
        %v1914 = vrot.slane %v1913, 4
        %v1915 = vadd.f32 %v1913, %v1914
        %v1916 = vrot.slane %v1915, 2
        %v1917 = vadd.f32 %v1915, %v1916
        %v1918 = vrot.slane %v1917, 1
        %v1919 = vadd.f32 %v1917, %v1918
        %v1920 = vsel %vm514, %v1782, 0.0
        %v1921 = vrot.slane %v1920, 4
        %v1922 = vadd.f32 %v1920, %v1921
        %v1923 = vrot.slane %v1922, 2
        %v1924 = vadd.f32 %v1922, %v1923
        %v1925 = vrot.slane %v1924, 1
        %v1926 = vadd.f32 %v1924, %v1925
        %v1927 = vsel %vm514, %v1783, 0.0
        %v1928 = vrot.slane %v1927, 4
        %v1929 = vadd.f32 %v1927, %v1928
        %v1930 = vrot.slane %v1929, 2
        %v1931 = vadd.f32 %v1929, %v1930
        %v1932 = vrot.slane %v1931, 1
        %v1933 = vadd.f32 %v1931, %v1932
        %v1934 = vsel %vm514, %v1784, 0.0
        %v1935 = vrot.slane %v1934, 4
        %v1936 = vadd.f32 %v1934, %v1935
        %v1937 = vrot.slane %v1936, 2
        %v1938 = vadd.f32 %v1936, %v1937
        %v1939 = vrot.slane %v1938, 1
        %v1940 = vadd.f32 %v1938, %v1939
        %v1941 = vsel %vm514, %v1785, 0.0
        %v1942 = vrot.slane %v1941, 4
        %v1943 = vadd.f32 %v1941, %v1942
        %v1944 = vrot.slane %v1943, 2
        %v1945 = vadd.f32 %v1943, %v1944
        %v1946 = vrot.slane %v1945, 1
        %v1947 = vadd.f32 %v1945, %v1946
        %v1948 = vsel %vm514, %v1786, 0.0
        %v1949 = vrot.slane %v1948, 4
        %v1950 = vadd.f32 %v1948, %v1949
        %v1951 = vrot.slane %v1950, 2
        %v1952 = vadd.f32 %v1950, %v1951
        %v1953 = vrot.slane %v1952, 1
        %v1954 = vadd.f32 %v1952, %v1953
        %v1955 = vpack.c.bf16 %v1633, %v1633
        %v1956 = vpack.c.bf16 %v1640, %v1640
        %v1957 = vpack.c.bf16 %v1647, %v1647
        %v1958 = vpack.c.bf16 %v1654, %v1654
        %v1959 = vpack.c.bf16 %v1661, %v1661
        %v1960 = vpack.c.bf16 %v1668, %v1668
        %v1961 = vpack.c.bf16 %v1675, %v1675
        %v1962 = vpack.c.bf16 %v1682, %v1682
        %v1964 = vlaneseq
        %v1965 = vshrl.u32 %v1964, 7
        %v1966 = vsub.s32 0, %v1965
        %v1967 = vrot.slane %v511, %v1966
        %v1976 = vunpack.c.l.b16 %v1955
        %v1977 = vunpack.c.l.b16 %v1956
        %v1978 = vunpack.c.l.b16 %v1957
        %v1979 = vunpack.c.l.b16 %v1958
        %v1980 = vunpack.c.l.b16 %v1959
        %v1981 = vunpack.c.l.b16 %v1960
        %v1982 = vunpack.c.l.b16 %v1961
        %v1983 = vunpack.c.l.b16 %v1962
        %vm1984 = vcmask 1041409
        %v1985 = vsel %vm1984, %v1977, %v1976
        %vm1986 = vcmask 1042434
        %v1987 = vsel %vm1986, %v1978, %v1985
        %vm1988 = vcmask 1043459
        %v1989 = vsel %vm1988, %v1979, %v1987
        %vm1990 = vcmask 1044484
        %v1991 = vsel %vm1990, %v1980, %v1989
        %vm1992 = vcmask 1045509
        %v1993 = vsel %vm1992, %v1981, %v1991
        %vm1994 = vcmask 1046534
        %v1995 = vsel %vm1994, %v1982, %v1993
        %vm1996 = vcmask 1047559
        %v1997 = vsel %vm1996, %v1983, %v1995
        %v1998 = vpack.c.b16 %v1997, %v1997
        %v2003 = vunpack.c.l.b16 %v490
        %v2004 = vunpack.c.h.b16 %v490
        %v2005 = vunpack.c.l.b16 %v491
        %v2006 = vunpack.c.h.b16 %v491
        %v2007 = vunpack.c.l.b16 %v492
        %v2008 = vunpack.c.h.b16 %v492
        %v2009 = vunpack.c.l.b16 %v493
        %v2010 = vunpack.c.h.b16 %v493
        %v2011 = vpack.c.b16 %v2005, %v2003
        %v2012 = vpack.c.b16 %v2006, %v2004
        %v2013 = vpack.c.b16 %v2009, %v2007
        %v2014 = vpack.c.b16 %v2010, %v2008
        %2015 = vrot.lane.b32.xlu0 %v2011, 32
        %v2016 = vpop.permute.xlu0 %2015
        %2017 = vrot.lane.b32.xlu0 %v2012, 32
        %v2018 = vpop.permute.xlu0 %2017
        %2019 = vrot.lane.b32.xlu0 %v2013, 32
        %v2020 = vpop.permute.xlu0 %2019
        %2021 = vrot.lane.b32.xlu0 %v2014, 32
        %v2022 = vpop.permute.xlu0 %2021
        %vm2023 = vcmask 261120
        %v2024 = vsel %vm2023, %v2016, %v2018
        %v2025 = vsel %vm2023, %v2020, %v2022
        %2028 = vrot.lane.b32.xlu0 %v1967, 96
        %v2029 = vpop.permute.xlu0 %2028
        %v2032 = vsel %vm514, %v1998, 0
        %2034 = vmatprep.subr.bf16.mxu0 0
        %2035 = vmatpush1.bf16.msra.mxu0 0
        %2036 = vmatprep.subr.bf16.mxu0 0
        %2037 = vmatpush1.bf16.msra.mxu0 0
        %2038 = vmatprep.subr.bf16.mxu0 0
        %2039 = vmatpush1.bf16.msra.mxu0 0
        %2040 = vmatprep.subr.bf16.mxu0 0
        %2041 = vmatpush1.bf16.msra.mxu0 0
        %2042 = vmatprep.subr.bf16.mxu0 0
        %2043 = vmatpush1.bf16.msra.mxu0 0
        %2044 = vmatprep.subr.bf16.mxu0 0
        %2045 = vmatpush1.bf16.msra.mxu0 0
        %2046 = vmatprep.subr.bf16.mxu0 0
        %2047 = vmatpush1.bf16.msra.mxu0 %v2025
        %2048 = vmatprep.subr.bf16.mxu0 0
        %2049 = vmatpush1.bf16.msra.mxu0 %v2024
        %2050 = vmatprep.subr.bf16.mxu0 0
        %2051 = vmatpush2.bf16.msra.mxu0 0
        %2052 = vmatprep.subr.bf16.mxu0 0
        %2053 = vmatpush2.bf16.msra.mxu0 0
        %2054 = vmatprep.subr.bf16.mxu0 0
        %2055 = vmatpush2.bf16.msra.mxu0 0
        %2056 = vmatprep.subr.bf16.mxu0 0
        %2057 = vmatpush2.bf16.msra.mxu0 0
        %2058 = vmatprep.subr.bf16.mxu0 0
        %2059 = vmatpush2.bf16.msra.mxu0 0
        %2060 = vmatprep.subr.bf16.mxu0 0
        %2061 = vmatpush2.bf16.msra.mxu0 0
        %2062 = vmatprep.subr.bf16.mxu0 0
        %2063 = vmatpush2.bf16.msra.mxu0 0
        %2064 = vmatprep.subr.bf16.mxu0 0
        %2065 = vmatpush2.bf16.msra.mxu0 0
        %2066 = vmatprep.mubr.bf16.mxu0 0
        %2067 = vmatmul.mubr.bf16.gmra.mxu0 %v2032
        %v2068 = vpop.f32.mrf.mxu0
        %v2069 = vadd.f32 %v2029, %v2068
        %v2070 = vpop.f32.mrf.mxu0
        %v2071 = vpop.f32.mrf.mxu0
        %v2072 = vpop.f32.mrf.mxu0
        %2073 = vdwg.mxu0
        %2075 = vrot.lane.b32.xlu0 %v2069, 96
        %v2076 = vpop.permute.xlu0 %2075
        %v2078 = vmul.f32 %v696, %v2076
        %v2079 = vadd.f32 %v470, %v2078
        %2080 = vrot.lane.b32.xlu0 %v2069, 64
        %v2081 = vpop.permute.xlu0 %2080
        %v2083 = vadd.f32 %v2079, %v2081
        %v2084 = vmul.f32 %v667, %v2081
        %v2085 = vmul.f32 %v670, %v2081
        %v2086 = vmul.f32 %v675, %v2081
        %2090 = vrot.lane.b32.xlu0 %v2084, 64
        %v2091 = vpop.permute.xlu0 %2090
        %2092 = vrot.lane.b32.xlu0 %v2085, 64
        %v2093 = vpop.permute.xlu0 %2092
        %2094 = vrot.lane.b32.xlu0 %v2086, 64
        %v2095 = vpop.permute.xlu0 %2094
        %v2099 = vadd.f32 %v471, %v2091
        %v2100 = vadd.f32 %v472, %v2093
        %v2101 = vadd.f32 %v473, %v2095
        %v2126 = vsel %vm1984, %v1800, %v1793
        %v2127 = vsel %vm1986, %v1807, %v2126
        %v2128 = vsel %vm1988, %v1814, %v2127
        %v2129 = vsel %vm1990, %v1821, %v2128
        %v2130 = vsel %vm1992, %v1828, %v2129
        %v2131 = vsel %vm1994, %v1835, %v2130
        %v2132 = vsel %vm1996, %v1842, %v2131
        %v2133 = vsel %vm1984, %v1856, %v1849
        %v2134 = vsel %vm1986, %v1863, %v2133
        %v2135 = vsel %vm1988, %v1870, %v2134
        %v2136 = vsel %vm1990, %v1877, %v2135
        %v2137 = vsel %vm1992, %v1884, %v2136
        %v2138 = vsel %vm1994, %v1891, %v2137
        %v2139 = vsel %vm1996, %v1898, %v2138
        %v2140 = vsel %vm1984, %v1912, %v1905
        %v2141 = vsel %vm1986, %v1919, %v2140
        %v2142 = vsel %vm1988, %v1926, %v2141
        %v2143 = vsel %vm1990, %v1933, %v2142
        %v2144 = vsel %vm1992, %v1940, %v2143
        %v2145 = vsel %vm1994, %v1947, %v2144
        %v2146 = vsel %vm1996, %v1954, %v2145
        %v2150 = vadd.f32 %v2099, %v2132
        %v2151 = vadd.f32 %v2100, %v2139
        %v2152 = vadd.f32 %v2101, %v2146
        %2153 = vst.msk [vmem:[#allocation4] sm:$0xff] %vm514, %v2150
        %2154 = vst.msk [vmem:[#allocation4 + $0x8] sm:$0xff] %vm514, %v2151
        %2155 = vst.msk [vmem:[#allocation4 + $0x10] sm:$0xff] %vm514, %v2152
        %v2156 = vsel %vm514, %v2083, 0.0
        %2157 = vadd.xlane.f32.xlu0 %v2156
        %v2158 = vpop.xlane.xlu0 %2157
        %v2159 = vmul.f32 %v2158, %v518
        %v2160 = vsub.f32 %v2083, %v2159
        %v2161 = vmul.f32 %v2160, %v2160
        %v2162 = vsel %vm514, %v2161, 0.0
        %2163 = vadd.xlane.f32.xlu0 %v2162
        %v2164 = vpop.xlane.xlu0 %2163
        %v2165 = vmul.f32 %v2164, %v518
        %v2166 = vadd.f32 %v2165, 1e-05
        %v2167 = vrsqrt.pop %v2166
        %v2168 = vmul.f32 %v2160, %v2167
        %v2170 = vlaneseq
        %v2171 = vshrl.u32 %v2170, 7
        %v2172 = vsub.s32 0, %v2171
        %v2173 = vrot.slane %v512, %v2172
        %v2175 = vmul.f32 %v2168, %v2173
        %2176 = vrot.lane.b32.xlu0 %v2173, 96
        %v2177 = vpop.permute.xlu0 %2176
        %v2179 = vadd.f32 %v2175, %v2177
        %v2180 = vpack.c.bf16 %v2179, %v2179
        %v2185 = vunpack.c.l.b16 %v494
        %v2186 = vunpack.c.l.b16 %v495
        %v2187 = vunpack.c.l.b16 %v496
        %v2188 = vunpack.c.l.b16 %v497
        %v2189 = vpack.c.b16 %v2186, %v2185
        %v2190 = vpack.c.b16 %v2188, %v2187
        %2191 = vrot.lane.b32.xlu0 %v2189, 64
        %v2192 = vpop.permute.xlu0 %2191
        %2193 = vrot.lane.b32.xlu0 %v2190, 64
        %v2194 = vpop.permute.xlu0 %2193
        %2197 = vrot.lane.b32.xlu0 %v2173, 64
        %v2198 = vpop.permute.xlu0 %2197
        %v2201 = vsel %vm514, %v2180, 0
        %2203 = vmatprep.subr.bf16.mxu0 0
        %2204 = vmatpush1.bf16.msra.mxu0 0
        %2205 = vmatprep.subr.bf16.mxu0 0
        %2206 = vmatpush1.bf16.msra.mxu0 0
        %2207 = vmatprep.subr.bf16.mxu0 0
        %2208 = vmatpush1.bf16.msra.mxu0 0
        %2209 = vmatprep.subr.bf16.mxu0 0
        %2210 = vmatpush1.bf16.msra.mxu0 0
        %2211 = vmatprep.subr.bf16.mxu0 0
        %2212 = vmatpush1.bf16.msra.mxu0 0
        %2213 = vmatprep.subr.bf16.mxu0 0
        %2214 = vmatpush1.bf16.msra.mxu0 0
        %2215 = vmatprep.subr.bf16.mxu0 0
        %2216 = vmatpush1.bf16.msra.mxu0 %v2194
        %2217 = vmatprep.subr.bf16.mxu0 0
        %2218 = vmatpush1.bf16.msra.mxu0 %v2192
        %2219 = vmatprep.subr.bf16.mxu0 0
        %2220 = vmatpush2.bf16.msra.mxu0 0
        %2221 = vmatprep.subr.bf16.mxu0 0
        %2222 = vmatpush2.bf16.msra.mxu0 0
        %2223 = vmatprep.subr.bf16.mxu0 0
        %2224 = vmatpush2.bf16.msra.mxu0 0
        %2225 = vmatprep.subr.bf16.mxu0 0
        %2226 = vmatpush2.bf16.msra.mxu0 0
        %2227 = vmatprep.subr.bf16.mxu0 0
        %2228 = vmatpush2.bf16.msra.mxu0 0
        %2229 = vmatprep.subr.bf16.mxu0 0
        %2230 = vmatpush2.bf16.msra.mxu0 0
        %2231 = vmatprep.subr.bf16.mxu0 0
        %2232 = vmatpush2.bf16.msra.mxu0 0
        %2233 = vmatprep.subr.bf16.mxu0 0
        %2234 = vmatpush2.bf16.msra.mxu0 0
        %2235 = vmatprep.mubr.bf16.mxu0 0
        %2236 = vmatmul.mubr.bf16.gmra.mxu0 %v2201
        %v2237 = vpop.f32.mrf.mxu0
        %v2238 = vadd.f32 %v2198, %v2237
        %v2239 = vpop.f32.mrf.mxu0
        %v2240 = vpop.f32.mrf.mxu0
        %v2241 = vpop.f32.mrf.mxu0
        %2242 = vdwg.mxu0
        %v2243 = vxor.u32 %v2238, 2147483648
        %v2244 = vmul.f32 %v2243, 1.442695
        %v2245 = vpow.pop %v2244
        %v2246 = vadd.f32 %v2245, 1.0
        %v2247 = vrcp.pop %v2246
        %v2248 = vmul.f32 1.0, %v2247
        %v2249 = vmul.f32 %v2238, %v2248
        %v2250 = vpack.c.bf16 %v2249, %v2249
        %v2252 = vlaneseq
        %v2253 = vshrl.u32 %v2252, 7
        %v2254 = vsub.s32 0, %v2253
        %v2255 = vrot.slane %v513, %v2254
        %v2265 = vunpack.c.l.b16 %v500
        %v2266 = vunpack.c.l.b16 %v501
        %v2267 = vunpack.c.l.b16 %v502
        %v2268 = vunpack.c.l.b16 %v503
        %v2269 = vunpack.c.l.b16 %v504
        %v2270 = vunpack.c.l.b16 %v505
        %v2271 = vunpack.c.l.b16 %v506
        %v2272 = vunpack.c.l.b16 %v507
        %v2273 = vpack.c.b16 %v2266, %v2265
        %v2274 = vpack.c.b16 %v2268, %v2267
        %v2275 = vpack.c.b16 %v2270, %v2269
        %v2276 = vpack.c.b16 %v2272, %v2271
        %v2282 = vsel %vm566, %v2250, 0
        %2284 = vmatprep.subr.bf16.mxu0 0
        %2285 = vmatpush1.bf16.msra.mxu0 0
        %2286 = vmatprep.subr.bf16.mxu0 0
        %2287 = vmatpush1.bf16.msra.mxu0 0
        %2288 = vmatprep.subr.bf16.mxu0 0
        %2289 = vmatpush1.bf16.msra.mxu0 0
        %2290 = vmatprep.subr.bf16.mxu0 0
        %2291 = vmatpush1.bf16.msra.mxu0 0
        %2292 = vmatprep.subr.bf16.mxu0 0
        %2293 = vmatpush1.bf16.msra.mxu0 %v2276
        %2294 = vmatprep.subr.bf16.mxu0 0
        %2295 = vmatpush1.bf16.msra.mxu0 %v2275
        %2296 = vmatprep.subr.bf16.mxu0 0
        %2297 = vmatpush1.bf16.msra.mxu0 %v2274
        %2298 = vmatprep.subr.bf16.mxu0 0
        %2299 = vmatpush1.bf16.msra.mxu0 %v2273
        %2300 = vmatprep.subr.bf16.mxu0 0
        %2301 = vmatpush2.bf16.msra.mxu0 0
        %2302 = vmatprep.subr.bf16.mxu0 0
        %2303 = vmatpush2.bf16.msra.mxu0 0
        %2304 = vmatprep.subr.bf16.mxu0 0
        %2305 = vmatpush2.bf16.msra.mxu0 0
        %2306 = vmatprep.subr.bf16.mxu0 0
        %2307 = vmatpush2.bf16.msra.mxu0 0
        %2308 = vmatprep.subr.bf16.mxu0 0
        %2309 = vmatpush2.bf16.msra.mxu0 0
        %2310 = vmatprep.subr.bf16.mxu0 0
        %2311 = vmatpush2.bf16.msra.mxu0 0
        %2312 = vmatprep.subr.bf16.mxu0 0
        %2313 = vmatpush2.bf16.msra.mxu0 0
        %2314 = vmatprep.subr.bf16.mxu0 0
        %2315 = vmatpush2.bf16.msra.mxu0 0
        %2316 = vmatprep.mubr.bf16.mxu0 0
        %2317 = vmatmul.mubr.bf16.gmra.mxu0 %v2282
        %v2318 = vpop.f32.mrf.mxu0
        %v2319 = vadd.f32 %v2255, %v2318
        %v2320 = vpop.f32.mrf.mxu0
        %v2321 = vpop.f32.mrf.mxu0
        %v2322 = vpop.f32.mrf.mxu0
        %2323 = vdwg.mxu0
        %v2324 = vadd.f32 %v2083, %v2319
        %2325 = vst.msk [vmem:[#allocation2] sm:$0xff] %vm514, %v2324
        // Predicated region
        $region69: #{processor_forward.1} parent=63 // pred_check
          %p2326 = pneg %p290
        $region70: #{processor_forward.1} parent=63 // pred_check_branch
          %2328 = sbr.rel (%p2326) target = $region72
        $region71: #{processor_forward.1} parent=63 // pred_region
          %s2330 = ssub.s32 128, 128
          %2331 = vsyncadd [#allocation3], %s2330
          %s2333 = sshll.u32 [#allocation2], 4
          %s2334 = int_to_ptr.vmem [resolvable:$true] %s2333
          %2336 = dma.vmem_to_hbm [thread:$0]  %s2334, 128, %s11, [#allocation3]
        $region72: #{processor_forward.1} parent=63 // pred_fallthru
          _
        // Predicated region
        $region73: #{processor_forward.1} parent=63 // pred_check
          %p2337 = pneg %p311
        $region74: #{processor_forward.1} parent=63 // pred_check_branch
          %2339 = sbr.rel (%p2337) target = $region76
        $region75: #{processor_forward.1} parent=63 // pred_region
          %s2341 = ssub.s32 384, 384
          %2342 = vsyncadd [#allocation5], %s2341
          %s2343 = sshll.u32 [#allocation4], 4
          %s2344 = int_to_ptr.vmem [resolvable:$true] %s2343
          %2349 = dma.vmem_to_hbm [thread:$0]  %s2344, 384, %s12, [#allocation5], 128, 128, 8
        $region76: #{processor_forward.1} parent=63 // pred_fallthru
          _
        // Predicated region
        $region77: #{processor_forward.1} parent=63 // pred_check
          %p2350 = pneg %p290
        $region78: #{processor_forward.1} parent=63 // pred_check_branch
          %2352 = sbr.rel (%p2350) target = $region80
        $region79: #{processor_forward.1} parent=63 // pred_region
          %2353 = dma.done [#allocation3], 128
        $region80: #{processor_forward.1} parent=63 // pred_fallthru
          _
        // Predicated region
        $region81: #{processor_forward.1} parent=63 // pred_check
          %p2354 = pneg %p311
        $region82: #{processor_forward.1} parent=63 // pred_check_branch
          %2356 = sbr.rel (%p2354) target = $region84
        $region83: #{processor_forward.1} parent=63 // pred_region
          %2357 = dma.done [#allocation5], 384
        $region84: #{processor_forward.1} parent=63 // pred_fallthru
          _
      $region64: #{processor_forward.1} parent=5 // pred_fallthru
        _
      %p2358 = scmp.le.s32.totalorder 2, %s21
      // Predicated region
      $region85: #{processor_forward.1} parent=5 // pred_check
        %p2359 = pneg %p2358
      $region86: #{processor_forward.1} parent=5 // pred_check_branch
        %2361 = sbr.rel (%p2359) target = $region88
      $region87: #{processor_forward.1} parent=5 // pred_region
        %s2362 = ssub.s32 %s21, 2
      $region88: #{processor_forward.1} parent=5 // pred_fallthru
        _
    $region6: #{processor_forward.1} parent=1 // loop_footer
      %s25 = sadd.s32 1, %s21
    $region7: #{processor_forward.1} parent=1 // loop_footer_branch
      %20 = sbr.rel target = $region3
    $region8: #{processor_forward.1} parent=1 // loop_exit
      _
    %2363 = vsyncpa [#allocation3], 1
    %s2364 = scalar_lea.sflag [#allocation3], 1
    %2365 = vsyncpa %s2364, 1
    %2366 = vsyncpa [#allocation5], 1

</llo_original>
